<compile_context>
chip_gen: v7x
topology: tpu7x:2x2x1
jax: 0.10.0
libtpu: 0.0.40
codegen_flags: <defaults>
</compile_context>

<pallas_src>
import functools
import math

import numpy as np
import jax
import jax.numpy as jnp
from jax.experimental import pallas as pl
from jax.experimental.pallas import tpu as pltpu


# Parameter vector layout (1-D SMEM): [w1, b1, b3, b5, w3(9), w5(25)]
_W1, _B1, _B3, _B5, _W3_OFF, _W5_OFF, _NPARAMS = 0, 1, 2, 3, 4, 13, 38


def _inception_kernel(p_ref, x_ref, m_ref, out_ref, *, H, R, n_vert, lstrip):
    """One grid step: an (n_vert x n_lane) block of zero-padded images.

    p_ref   : (38,) f32 SMEM scalars [w1, b1, b3, b5, w3(9), w5(25)]
    x_ref   : (n_vert*R, Wli) zero-padded packed input (R = H+4 rows per vertical
              slot, S = W+4 lanes per lane slot, lane dim padded to Wlo+8)
    m_ref   : (n_vert*R, Wli) pool mask: 0 inside each image, -inf outside
    out_ref : (4, n_vert*H, Wlo), Wlo a multiple of 128
              (channel order: 1x1, 3x3, 5x5, maxpool)
    """
    Wlo = out_ref.shape[-1]
    n_strips = Wlo // lstrip

    # Scalar parameters, hoisted out of the MAC chains.
    w1 = p_ref[_W1]
    b1 = p_ref[_B1]
    b3 = p_ref[_B3]
    b5 = p_ref[_B5]
    w3 = [p_ref[_W3_OFF + k] for k in range(9)]
    w5 = [p_ref[_W5_OFF + k] for k in range(25)]

    # Static lane-strip tiling: every slice below has static offsets, so the
    # loads/stores carry the 5x5 shifts and only small (H, lstrip) accumulators
    # are live per strip.
    for s in range(n_strips):
        c0 = s * lstrip
        for v in range(n_vert):
            r0 = v * R          # input row offset of this vertical image slot
            ro = v * H          # output row offset of this vertical image slot

            def tap(di, dj, ref):
                # (H, lstrip) slab for tap (di, dj), sliced straight from the ref.
                return ref[pl.ds(r0 + di, H), pl.ds(c0 + dj, lstrip)]

            # --- branch 1: 1x1 conv + ReLU (center tap = (2, 2)) -------------
            out_ref[0, pl.ds(ro, H), pl.ds(c0, lstrip)] = jnp.maximum(
                tap(2, 2, x_ref) * w1 + b1, 0.0)

            # --- branches 2 / 3 / 4: the 9 central taps are shared; the 5x5
            #     conv adds the outer ring.  Two partial accumulators per
            #     reduction break the long dependent chains.
            a5 = [None, None]   # 5x5 conv partials
            a3 = [None, None]   # 3x3 conv partials
            pm = [None, None]   # 3x3 maxpool partials
            k5 = k3 = kp = 0
            for di in range(5):
                for dj in range(5):
                    t = tap(di, dj, x_ref)
                    u5 = t * w5[di * 5 + dj]
                    i = k5 & 1
                    a5[i] = u5 if a5[i] is None else a5[i] + u5
                    k5 += 1
                    if 1 <= di <= 3 and 1 <= dj <= 3:
                        u3 = t * w3[(di - 1) * 3 + (dj - 1)]
                        i = k3 & 1
                        a3[i] = u3 if a3[i] is None else a3[i] + u3
                        k3 += 1
                        tp = t + tap(di, dj, m_ref)   # -inf outside the image
                        i = kp & 1
                        pm[i] = tp if pm[i] is None else jnp.maximum(pm[i], tp)
                        kp += 1

            out_ref[1, pl.ds(ro, H), pl.ds(c0, lstrip)] = jnp.maximum(
                (a3[0] + a3[1]) + b3, 0.0)
            out_ref[2, pl.ds(ro, H), pl.ds(c0, lstrip)] = jnp.maximum(
                (a5[0] + a5[1]) + b5, 0.0)
            out_ref[3, pl.ds(ro, H), pl.ds(c0, lstrip)] = jnp.maximum(pm[0], pm[1])


def _choose_packing(N, H, W):
    """Images per grid step as an (n_vert x n_lane) block.

    Targets >=2048 useful lanes and (when cheap) an 8-sublane-aligned row count
    per step, but never packs so hard that fewer than 2 grid steps remain
    (v7x: the "parallel" batch-block axis shards across its 2 TensorCores).
    """
    S, R = W + 4, H + 4
    cap = max(1, (N + 1) // 2)                     # keep G = ceil(N/n_img) >= 2
    v_align = 8 // math.gcd(R, 8)                  # rows -> multiple of 8 sublanes
    n_vert = v_align if (v_align > 1 and cap >= v_align and v_align * R <= 64) else 1
    n_lane = max(1, min(cap // n_vert, -(-2048 // S)))
    return n_vert, n_lane


def inception_forward(x, params):
    """x: (N, 1, H, W) float32.  Returns (cat, x1, x2, x3, x4) like the torch module."""
    w1, b1, w3, b3, w5, b5 = params
    N, C, H, W = x.shape
    assert C == 1, "Inception module expects a single input channel"
    x = x.astype(jnp.float32)

    S, R = W + 4, H + 4
    n_vert, n_lane = _choose_packing(N, H, W)
    n_img = n_vert * n_lane
    G = -(-N // n_img)                         # grid size (image blocks)
    N_pad = G * n_img

    Rtot = n_vert * R                          # packed input rows per step
    Hout = n_vert * H                          # packed output rows per step
    Wlo = -(-(n_lane * S) // 128) * 128        # lane-dense output width (x128)
    Wli = Wlo + 8                              # room for the widest (+4) tap shift
    lstrip = 256 if Wlo % 256 == 0 else 128    # static lane-strip width

    # --- packed, zero-padded input: (G, Rtot, Wli) ---------------------------
    xi = jnp.pad(x[:, 0], ((0, N_pad - N), (2, 2), (2, 2)))       # (N_pad, R, S)
    xpk = (xi.reshape(G, n_vert, n_lane, R, S)
             .transpose(0, 1, 3, 2, 4)
             .reshape(G, Rtot, n_lane * S))
    xpk = jnp.pad(xpk, ((0, 0), (0, 0), (0, Wli - n_lane * S)))

    # --- precomputed maxpool boundary mask (grid-constant, tiny) -------------
    mnp = np.full((Rtot, Wli), -np.inf, dtype=np.float32)
    for v in range(n_vert):
        for m in range(n_lane):
            mnp[v * R + 2:v * R + 2 + H, m * S + 2:m * S + 2 + W] = 0.0
    mask = jnp.asarray(mnp)

    # --- flattened 1-D SMEM parameter vector: [w1, b1, b3, b5, w3(9), w5(25)] -
    pvec = jnp.concatenate([
        jnp.reshape(w1, (-1,)), jnp.reshape(b1, (-1,)),
        jnp.reshape(b3, (-1,)), jnp.reshape(b5, (-1,)),
        jnp.reshape(w3, (-1,)), jnp.reshape(w5, (-1,)),
    ]).astype(jnp.float32)
    assert pvec.shape == (_NPARAMS,)

    kernel = functools.partial(_inception_kernel, H=H, R=R, n_vert=n_vert,
                               lstrip=lstrip)

    # NOTE: for very large H/W add a spatial (row) grid axis and rebudget blocks
    # against v7x's 64 MiB VMEM / v5e's 16 MiB scoped default; at the packing
    # caps above the whole block (incl. double buffering) stays under ~4 MiB.
    out_packed = pl.pallas_call(
        kernel,
        out_shape=jax.ShapeDtypeStruct((G, 4, Hout, Wlo), jnp.float32),
        grid=(G,),
        in_specs=[
            pl.BlockSpec(memory_space=pltpu.MemorySpace.SMEM),            # params
            pl.BlockSpec((None, Rtot, Wli), lambda g: (g, 0, 0)),         # packed x
            pl.BlockSpec((Rtot, Wli), lambda g: (0, 0)),                  # pool mask
        ],
        out_specs=pl.BlockSpec((None, 4, Hout, Wlo), lambda g: (g, 0, 0, 0)),
        compiler_params=pltpu.CompilerParams(
            dimension_semantics=("parallel",),
            vmem_limit_bytes=32 * 1024 * 1024),
    )(pvec, xpk, mask)

    # --- unpack (pure layout; no masked-store padding left to strip).  A consumer
    # that accepts the packed (G, 4, Hout, Wlo) layout can skip this entirely.
    cat = (out_packed[..., :n_lane * S]
           .reshape(G, 4, n_vert, H, n_lane, S)[..., :W]
           .transpose(0, 2, 4, 1, 3, 5)
           .reshape(N_pad, 4, H, W)[:N])

    x1 = cat[:, 0:1]
    x2 = cat[:, 1:2]
    x3 = cat[:, 2:3]
    x4 = cat[:, 3:4]
    return cat, x1, x2, x3, x4


def _reference(x, params):
    """Pure-JAX reference of the torch forward pass (for verification)."""
    w1, b1, w3, b3, w5, b5 = params
    x = x.astype(jnp.float32)

    def conv_relu(w2d, b, pad):
        w4 = w2d.reshape(1, 1, *w2d.shape)
        y = jax.lax.conv_general_dilated(
            x, w4, window_strides=(1, 1), padding=[(pad, pad), (pad, pad)],
            dimension_numbers=("NCHW", "OIHW", "NCHW"))
        return jnp.maximum(y + b.reshape(1, 1, 1, 1), 0.0)

    x1 = conv_relu(w1.reshape(1, 1), b1, 0)
    x2 = conv_relu(w3, b3, 1)
    x3 = conv_relu(w5, b5, 2)
    x4 = jax.lax.reduce_window(
        x, -jnp.inf, jax.lax.max,
        window_dimensions=(1, 1, 3, 3), window_strides=(1, 1, 1, 1),
        padding=[(0, 0), (0, 0), (1, 1), (1, 1)])
    return jnp.concatenate([x1, x2, x3, x4], axis=1)


if __name__ == "__main__":
    key = jax.random.PRNGKey(0)
    kx, k1, kb1, k3, kb3, k5, kb5 = jax.random.split(key, 7)

    # Deterministic synthetic parameters (module __init__ shapes: all 1->1 channel).
    params = (
        jax.random.normal(k1, (1,), jnp.float32) * 0.5,     # conv1x1 weight
        jax.random.normal(kb1, (1,), jnp.float32) * 0.1,    # conv1x1 bias
        jax.random.normal(k3, (3, 3), jnp.float32) * 0.3,   # conv3x3 weight
        jax.random.normal(kb3, (1,), jnp.float32) * 0.1,    # conv3x3 bias
        jax.random.normal(k5, (5, 5), jnp.float32) * 0.2,   # conv5x5 weight
        jax.random.normal(kb5, (1,), jnp.float32) * 0.1,    # conv5x5 bias
    )

    # Small input consistent with the module: N=2, C=1, H=W=16.
    x = jax.random.normal(kx, (2, 1, 16, 16), jnp.float32)

    cat, x1, x2, x3, x4 = inception_forward(x, params)
    cat = jax.block_until_ready(cat)

    ref = jax.block_until_ready(_reference(x, params))
    assert cat.shape == (2, 4, 16, 16)
    np.testing.assert_allclose(np.asarray(cat), np.asarray(ref), rtol=1e-5, atol=1e-5)

    # Mirror the torch return convention (branch outputs as numpy arrays).
    out_tuple = (cat, np.asarray(x1), np.asarray(x2), np.asarray(x3), np.asarray(x4))
    assert out_tuple[1].shape == (2, 1, 16, 16)

    print("KERNEL_OK")
</pallas_src>

<mosaic_0001>
module attributes {stable_mosaic.version = 11 : i64} {
  func.func @_inception_kernel(%arg0: i32, %arg1: memref<38xf32, #tpu.memory_space<smem>>, %arg2: memref<1x20x136xf32, #tpu.memory_space<vmem>>, %arg3: memref<20x136xf32, #tpu.memory_space<vmem>>, %arg4: memref<1x4x16x128xf32, #tpu.memory_space<vmem>>) attributes {dimension_semantics = [#tpu.dimension_semantics<parallel>], iteration_bounds = array<i64: 2>, scalar_prefetch = 0 : i64, scratch_operands = 0 : i64, tpu.core_type = #tpu.core_type<tc>, window_params = [{transform_indices = @transform_0, window_bounds = array<i64: 38>}, {transform_indices = @transform_1, window_bounds = array<i64: 1, 20, 136>}, {pipeline_mode = #tpu.pipeline_mode<synchronous>, transform_indices = @transform_2, window_bounds = array<i64: 20, 136>}, {transform_indices = @transform_3, window_bounds = array<i64: 1, 4, 16, 128>}]} {
    %c0 = arith.constant 0 : index
    %0 = memref.load %arg1[%c0] : memref<38xf32, #tpu.memory_space<smem>>
    %c1 = arith.constant 1 : index
    %1 = memref.load %arg1[%c1] : memref<38xf32, #tpu.memory_space<smem>>
    %c2 = arith.constant 2 : index
    %2 = memref.load %arg1[%c2] : memref<38xf32, #tpu.memory_space<smem>>
    %c3 = arith.constant 3 : index
    %3 = memref.load %arg1[%c3] : memref<38xf32, #tpu.memory_space<smem>>
    %c4 = arith.constant 4 : index
    %4 = memref.load %arg1[%c4] : memref<38xf32, #tpu.memory_space<smem>>
    %c5 = arith.constant 5 : index
    %5 = memref.load %arg1[%c5] : memref<38xf32, #tpu.memory_space<smem>>
    %c6 = arith.constant 6 : index
    %6 = memref.load %arg1[%c6] : memref<38xf32, #tpu.memory_space<smem>>
    %c7 = arith.constant 7 : index
    %7 = memref.load %arg1[%c7] : memref<38xf32, #tpu.memory_space<smem>>
    %c8 = arith.constant 8 : index
    %8 = memref.load %arg1[%c8] : memref<38xf32, #tpu.memory_space<smem>>
    %c9 = arith.constant 9 : index
    %9 = memref.load %arg1[%c9] : memref<38xf32, #tpu.memory_space<smem>>
    %c10 = arith.constant 10 : index
    %10 = memref.load %arg1[%c10] : memref<38xf32, #tpu.memory_space<smem>>
    %c11 = arith.constant 11 : index
    %11 = memref.load %arg1[%c11] : memref<38xf32, #tpu.memory_space<smem>>
    %c12 = arith.constant 12 : index
    %12 = memref.load %arg1[%c12] : memref<38xf32, #tpu.memory_space<smem>>
    %c13 = arith.constant 13 : index
    %13 = memref.load %arg1[%c13] : memref<38xf32, #tpu.memory_space<smem>>
    %c14 = arith.constant 14 : index
    %14 = memref.load %arg1[%c14] : memref<38xf32, #tpu.memory_space<smem>>
    %c15 = arith.constant 15 : index
    %15 = memref.load %arg1[%c15] : memref<38xf32, #tpu.memory_space<smem>>
    %c16 = arith.constant 16 : index
    %16 = memref.load %arg1[%c16] : memref<38xf32, #tpu.memory_space<smem>>
    %c17 = arith.constant 17 : index
    %17 = memref.load %arg1[%c17] : memref<38xf32, #tpu.memory_space<smem>>
    %c18 = arith.constant 18 : index
    %18 = memref.load %arg1[%c18] : memref<38xf32, #tpu.memory_space<smem>>
    %c19 = arith.constant 19 : index
    %19 = memref.load %arg1[%c19] : memref<38xf32, #tpu.memory_space<smem>>
    %c20 = arith.constant 20 : index
    %20 = memref.load %arg1[%c20] : memref<38xf32, #tpu.memory_space<smem>>
    %c21 = arith.constant 21 : index
    %21 = memref.load %arg1[%c21] : memref<38xf32, #tpu.memory_space<smem>>
    %c22 = arith.constant 22 : index
    %22 = memref.load %arg1[%c22] : memref<38xf32, #tpu.memory_space<smem>>
    %c23 = arith.constant 23 : index
    %23 = memref.load %arg1[%c23] : memref<38xf32, #tpu.memory_space<smem>>
    %c24 = arith.constant 24 : index
    %24 = memref.load %arg1[%c24] : memref<38xf32, #tpu.memory_space<smem>>
    %c25 = arith.constant 25 : index
    %25 = memref.load %arg1[%c25] : memref<38xf32, #tpu.memory_space<smem>>
    %c26 = arith.constant 26 : index
    %26 = memref.load %arg1[%c26] : memref<38xf32, #tpu.memory_space<smem>>
    %c27 = arith.constant 27 : index
    %27 = memref.load %arg1[%c27] : memref<38xf32, #tpu.memory_space<smem>>
    %c28 = arith.constant 28 : index
    %28 = memref.load %arg1[%c28] : memref<38xf32, #tpu.memory_space<smem>>
    %c29 = arith.constant 29 : index
    %29 = memref.load %arg1[%c29] : memref<38xf32, #tpu.memory_space<smem>>
    %c30 = arith.constant 30 : index
    %30 = memref.load %arg1[%c30] : memref<38xf32, #tpu.memory_space<smem>>
    %c31 = arith.constant 31 : index
    %31 = memref.load %arg1[%c31] : memref<38xf32, #tpu.memory_space<smem>>
    %c32 = arith.constant 32 : index
    %32 = memref.load %arg1[%c32] : memref<38xf32, #tpu.memory_space<smem>>
    %c33 = arith.constant 33 : index
    %33 = memref.load %arg1[%c33] : memref<38xf32, #tpu.memory_space<smem>>
    %c34 = arith.constant 34 : index
    %34 = memref.load %arg1[%c34] : memref<38xf32, #tpu.memory_space<smem>>
    %c35 = arith.constant 35 : index
    %35 = memref.load %arg1[%c35] : memref<38xf32, #tpu.memory_space<smem>>
    %c36 = arith.constant 36 : index
    %36 = memref.load %arg1[%c36] : memref<38xf32, #tpu.memory_space<smem>>
    %c37 = arith.constant 37 : index
    %37 = memref.load %arg1[%c37] : memref<38xf32, #tpu.memory_space<smem>>
    %c0_0 = arith.constant 0 : index
    %c2_1 = arith.constant 2 : index
    %c2_2 = arith.constant 2 : index
    %38 = vector.load %arg2[%c0_0, %c2_1, %c2_2] : memref<1x20x136xf32, #tpu.memory_space<vmem>>, vector<1x16x128xf32>
    %39 = vector.shape_cast %38 : vector<1x16x128xf32> to vector<16x128xf32>
    %40 = vector.broadcast %0 : f32 to vector<16x128xf32>
    %41 = arith.mulf %39, %40 : vector<16x128xf32>
    %42 = vector.broadcast %1 : f32 to vector<16x128xf32>
    %43 = arith.addf %41, %42 : vector<16x128xf32>
    %cst = arith.constant 0.000000e+00 : f32
    %44 = vector.broadcast %cst : f32 to vector<16x128xf32>
    %45 = arith.maximumf %43, %44 : vector<16x128xf32>
    %c0_3 = arith.constant 0 : index
    %c0_4 = arith.constant 0 : index
    %c0_5 = arith.constant 0 : index
    %c0_6 = arith.constant 0 : index
    %46 = vector.load %arg4[%c0_3, %c0_4, %c0_5, %c0_6] : memref<1x4x16x128xf32, #tpu.memory_space<vmem>>, vector<1x1x16x128xf32>
    %47 = vector.shape_cast %46 : vector<1x1x16x128xf32> to vector<16x128xf32>
    %48 = vector.shape_cast %45 : vector<16x128xf32> to vector<1x1x16x128xf32>
    tpu.vector_store %arg4[%c0_3, %c0_4, %c0_5, %c0_6], %48 {strides = array<i32>} : memref<1x4x16x128xf32, #tpu.memory_space<vmem>>, vector<1x1x16x128xf32>,
    %c0_7 = arith.constant 0 : index
    %c0_8 = arith.constant 0 : index
    %c0_9 = arith.constant 0 : index
    %49 = vector.load %arg2[%c0_7, %c0_8, %c0_9] : memref<1x20x136xf32, #tpu.memory_space<vmem>>, vector<1x16x128xf32>
    %50 = vector.shape_cast %49 : vector<1x16x128xf32> to vector<16x128xf32>
    %51 = vector.broadcast %13 : f32 to vector<16x128xf32>
    %52 = arith.mulf %50, %51 : vector<16x128xf32>
    %c0_10 = arith.constant 0 : index
    %c0_11 = arith.constant 0 : index
    %c1_12 = arith.constant 1 : index
    %53 = vector.load %arg2[%c0_10, %c0_11, %c1_12] : memref<1x20x136xf32, #tpu.memory_space<vmem>>, vector<1x16x128xf32>
    %54 = vector.shape_cast %53 : vector<1x16x128xf32> to vector<16x128xf32>
    %55 = vector.broadcast %14 : f32 to vector<16x128xf32>
    %56 = arith.mulf %54, %55 : vector<16x128xf32>
    %c0_13 = arith.constant 0 : index
    %c0_14 = arith.constant 0 : index
    %c2_15 = arith.constant 2 : index
    %57 = vector.load %arg2[%c0_13, %c0_14, %c2_15] : memref<1x20x136xf32, #tpu.memory_space<vmem>>, vector<1x16x128xf32>
    %58 = vector.shape_cast %57 : vector<1x16x128xf32> to vector<16x128xf32>
    %59 = vector.broadcast %15 : f32 to vector<16x128xf32>
    %60 = arith.mulf %58, %59 : vector<16x128xf32>
    %61 = arith.addf %52, %60 : vector<16x128xf32>
    %c0_16 = arith.constant 0 : index
    %c0_17 = arith.constant 0 : index
    %c3_18 = arith.constant 3 : index
    %62 = vector.load %arg2[%c0_16, %c0_17, %c3_18] : memref<1x20x136xf32, #tpu.memory_space<vmem>>, vector<1x16x128xf32>
    %63 = vector.shape_cast %62 : vector<1x16x128xf32> to vector<16x128xf32>
    %64 = vector.broadcast %16 : f32 to vector<16x128xf32>
    %65 = arith.mulf %63, %64 : vector<16x128xf32>
    %66 = arith.addf %56, %65 : vector<16x128xf32>
    %c0_19 = arith.constant 0 : index
    %c0_20 = arith.constant 0 : index
    %c4_21 = arith.constant 4 : index
    %67 = vector.load %arg2[%c0_19, %c0_20, %c4_21] : memref<1x20x136xf32, #tpu.memory_space<vmem>>, vector<1x16x128xf32>
    %68 = vector.shape_cast %67 : vector<1x16x128xf32> to vector<16x128xf32>
    %69 = vector.broadcast %17 : f32 to vector<16x128xf32>
    %70 = arith.mulf %68, %69 : vector<16x128xf32>
    %71 = arith.addf %61, %70 : vector<16x128xf32>
    %c0_22 = arith.constant 0 : index
    %c1_23 = arith.constant 1 : index
    %c0_24 = arith.constant 0 : index
    %72 = vector.load %arg2[%c0_22, %c1_23, %c0_24] : memref<1x20x136xf32, #tpu.memory_space<vmem>>, vector<1x16x128xf32>
    %73 = vector.shape_cast %72 : vector<1x16x128xf32> to vector<16x128xf32>
    %74 = vector.broadcast %18 : f32 to vector<16x128xf32>
    %75 = arith.mulf %73, %74 : vector<16x128xf32>
    %76 = arith.addf %66, %75 : vector<16x128xf32>
    %c0_25 = arith.constant 0 : index
    %c1_26 = arith.constant 1 : index
    %c1_27 = arith.constant 1 : index
    %77 = vector.load %arg2[%c0_25, %c1_26, %c1_27] : memref<1x20x136xf32, #tpu.memory_space<vmem>>, vector<1x16x128xf32>
    %78 = vector.shape_cast %77 : vector<1x16x128xf32> to vector<16x128xf32>
    %79 = vector.broadcast %19 : f32 to vector<16x128xf32>
    %80 = arith.mulf %78, %79 : vector<16x128xf32>
    %81 = arith.addf %71, %80 : vector<16x128xf32>
    %82 = vector.broadcast %4 : f32 to vector<16x128xf32>
    %83 = arith.mulf %78, %82 : vector<16x128xf32>
    %c1_28 = arith.constant 1 : index
    %c1_29 = arith.constant 1 : index
    %84 = vector.load %arg3[%c1_28, %c1_29] : memref<20x136xf32, #tpu.memory_space<vmem>>, vector<16x128xf32>
    %85 = arith.addf %78, %84 : vector<16x128xf32>
    %c0_30 = arith.constant 0 : index
    %c1_31 = arith.constant 1 : index
    %c2_32 = arith.constant 2 : index
    %86 = vector.load %arg2[%c0_30, %c1_31, %c2_32] : memref<1x20x136xf32, #tpu.memory_space<vmem>>, vector<1x16x128xf32>
    %87 = vector.shape_cast %86 : vector<1x16x128xf32> to vector<16x128xf32>
    %88 = vector.broadcast %20 : f32 to vector<16x128xf32>
    %89 = arith.mulf %87, %88 : vector<16x128xf32>
    %90 = arith.addf %76, %89 : vector<16x128xf32>
    %91 = vector.broadcast %5 : f32 to vector<16x128xf32>
    %92 = arith.mulf %87, %91 : vector<16x128xf32>
    %c1_33 = arith.constant 1 : index
    %c2_34 = arith.constant 2 : index
    %93 = vector.load %arg3[%c1_33, %c2_34] : memref<20x136xf32, #tpu.memory_space<vmem>>, vector<16x128xf32>
    %94 = arith.addf %87, %93 : vector<16x128xf32>
    %c0_35 = arith.constant 0 : index
    %c1_36 = arith.constant 1 : index
    %c3_37 = arith.constant 3 : index
    %95 = vector.load %arg2[%c0_35, %c1_36, %c3_37] : memref<1x20x136xf32, #tpu.memory_space<vmem>>, vector<1x16x128xf32>
    %96 = vector.shape_cast %95 : vector<1x16x128xf32> to vector<16x128xf32>
    %97 = vector.broadcast %21 : f32 to vector<16x128xf32>
    %98 = arith.mulf %96, %97 : vector<16x128xf32>
    %99 = arith.addf %81, %98 : vector<16x128xf32>
    %100 = vector.broadcast %6 : f32 to vector<16x128xf32>
    %101 = arith.mulf %96, %100 : vector<16x128xf32>
    %102 = arith.addf %83, %101 : vector<16x128xf32>
    %c1_38 = arith.constant 1 : index
    %c3_39 = arith.constant 3 : index
    %103 = vector.load %arg3[%c1_38, %c3_39] : memref<20x136xf32, #tpu.memory_space<vmem>>, vector<16x128xf32>
    %104 = arith.addf %96, %103 : vector<16x128xf32>
    %105 = arith.maximumf %85, %104 : vector<16x128xf32>
    %c0_40 = arith.constant 0 : index
    %c1_41 = arith.constant 1 : index
    %c4_42 = arith.constant 4 : index
    %106 = vector.load %arg2[%c0_40, %c1_41, %c4_42] : memref<1x20x136xf32, #tpu.memory_space<vmem>>, vector<1x16x128xf32>
    %107 = vector.shape_cast %106 : vector<1x16x128xf32> to vector<16x128xf32>
    %108 = vector.broadcast %22 : f32 to vector<16x128xf32>
    %109 = arith.mulf %107, %108 : vector<16x128xf32>
    %110 = arith.addf %90, %109 : vector<16x128xf32>
    %c0_43 = arith.constant 0 : index
    %c2_44 = arith.constant 2 : index
    %c0_45 = arith.constant 0 : index
    %111 = vector.load %arg2[%c0_43, %c2_44, %c0_45] : memref<1x20x136xf32, #tpu.memory_space<vmem>>, vector<1x16x128xf32>
    %112 = vector.shape_cast %111 : vector<1x16x128xf32> to vector<16x128xf32>
    %113 = vector.broadcast %23 : f32 to vector<16x128xf32>
    %114 = arith.mulf %112, %113 : vector<16x128xf32>
    %115 = arith.addf %99, %114 : vector<16x128xf32>
    %c0_46 = arith.constant 0 : index
    %c2_47 = arith.constant 2 : index
    %c1_48 = arith.constant 1 : index
    %116 = vector.load %arg2[%c0_46, %c2_47, %c1_48] : memref<1x20x136xf32, #tpu.memory_space<vmem>>, vector<1x16x128xf32>
    %117 = vector.shape_cast %116 : vector<1x16x128xf32> to vector<16x128xf32>
    %118 = vector.broadcast %24 : f32 to vector<16x128xf32>
    %119 = arith.mulf %117, %118 : vector<16x128xf32>
    %120 = arith.addf %110, %119 : vector<16x128xf32>
    %121 = vector.broadcast %7 : f32 to vector<16x128xf32>
    %122 = arith.mulf %117, %121 : vector<16x128xf32>
    %123 = arith.addf %92, %122 : vector<16x128xf32>
    %c2_49 = arith.constant 2 : index
    %c1_50 = arith.constant 1 : index
    %124 = vector.load %arg3[%c2_49, %c1_50] : memref<20x136xf32, #tpu.memory_space<vmem>>, vector<16x128xf32>
    %125 = arith.addf %117, %124 : vector<16x128xf32>
    %126 = arith.maximumf %94, %125 : vector<16x128xf32>
    %c0_51 = arith.constant 0 : index
    %c2_52 = arith.constant 2 : index
    %c2_53 = arith.constant 2 : index
    %127 = vector.load %arg2[%c0_51, %c2_52, %c2_53] : memref<1x20x136xf32, #tpu.memory_space<vmem>>, vector<1x16x128xf32>
    %128 = vector.shape_cast %127 : vector<1x16x128xf32> to vector<16x128xf32>
    %129 = vector.broadcast %25 : f32 to vector<16x128xf32>
    %130 = arith.mulf %128, %129 : vector<16x128xf32>
    %131 = arith.addf %115, %130 : vector<16x128xf32>
    %132 = vector.broadcast %8 : f32 to vector<16x128xf32>
    %133 = arith.mulf %128, %132 : vector<16x128xf32>
    %134 = arith.addf %102, %133 : vector<16x128xf32>
    %c2_54 = arith.constant 2 : index
    %c2_55 = arith.constant 2 : index
    %135 = vector.load %arg3[%c2_54, %c2_55] : memref<20x136xf32, #tpu.memory_space<vmem>>, vector<16x128xf32>
    %136 = arith.addf %128, %135 : vector<16x128xf32>
    %137 = arith.maximumf %105, %136 : vector<16x128xf32>
    %c0_56 = arith.constant 0 : index
    %c2_57 = arith.constant 2 : index
    %c3_58 = arith.constant 3 : index
    %138 = vector.load %arg2[%c0_56, %c2_57, %c3_58] : memref<1x20x136xf32, #tpu.memory_space<vmem>>, vector<1x16x128xf32>
    %139 = vector.shape_cast %138 : vector<1x16x128xf32> to vector<16x128xf32>
    %140 = vector.broadcast %26 : f32 to vector<16x128xf32>
    %141 = arith.mulf %139, %140 : vector<16x128xf32>
    %142 = arith.addf %120, %141 : vector<16x128xf32>
    %143 = vector.broadcast %9 : f32 to vector<16x128xf32>
    %144 = arith.mulf %139, %143 : vector<16x128xf32>
    %145 = arith.addf %123, %144 : vector<16x128xf32>
    %c2_59 = arith.constant 2 : index
    %c3_60 = arith.constant 3 : index
    %146 = vector.load %arg3[%c2_59, %c3_60] : memref<20x136xf32, #tpu.memory_space<vmem>>, vector<16x128xf32>
    %147 = arith.addf %139, %146 : vector<16x128xf32>
    %148 = arith.maximumf %126, %147 : vector<16x128xf32>
    %c0_61 = arith.constant 0 : index
    %c2_62 = arith.constant 2 : index
    %c4_63 = arith.constant 4 : index
    %149 = vector.load %arg2[%c0_61, %c2_62, %c4_63] : memref<1x20x136xf32, #tpu.memory_space<vmem>>, vector<1x16x128xf32>
    %150 = vector.shape_cast %149 : vector<1x16x128xf32> to vector<16x128xf32>
    %151 = vector.broadcast %27 : f32 to vector<16x128xf32>
    %152 = arith.mulf %150, %151 : vector<16x128xf32>
    %153 = arith.addf %131, %152 : vector<16x128xf32>
    %c0_64 = arith.constant 0 : index
    %c3_65 = arith.constant 3 : index
    %c0_66 = arith.constant 0 : index
    %154 = vector.load %arg2[%c0_64, %c3_65, %c0_66] : memref<1x20x136xf32, #tpu.memory_space<vmem>>, vector<1x16x128xf32>
    %155 = vector.shape_cast %154 : vector<1x16x128xf32> to vector<16x128xf32>
    %156 = vector.broadcast %28 : f32 to vector<16x128xf32>
    %157 = arith.mulf %155, %156 : vector<16x128xf32>
    %158 = arith.addf %142, %157 : vector<16x128xf32>
    %c0_67 = arith.constant 0 : index
    %c3_68 = arith.constant 3 : index
    %c1_69 = arith.constant 1 : index
    %159 = vector.load %arg2[%c0_67, %c3_68, %c1_69] : memref<1x20x136xf32, #tpu.memory_space<vmem>>, vector<1x16x128xf32>
    %160 = vector.shape_cast %159 : vector<1x16x128xf32> to vector<16x128xf32>
    %161 = vector.broadcast %29 : f32 to vector<16x128xf32>
    %162 = arith.mulf %160, %161 : vector<16x128xf32>
    %163 = arith.addf %153, %162 : vector<16x128xf32>
    %164 = vector.broadcast %10 : f32 to vector<16x128xf32>
    %165 = arith.mulf %160, %164 : vector<16x128xf32>
    %166 = arith.addf %134, %165 : vector<16x128xf32>
    %c3_70 = arith.constant 3 : index
    %c1_71 = arith.constant 1 : index
    %167 = vector.load %arg3[%c3_70, %c1_71] : memref<20x136xf32, #tpu.memory_space<vmem>>, vector<16x128xf32>
    %168 = arith.addf %160, %167 : vector<16x128xf32>
    %169 = arith.maximumf %137, %168 : vector<16x128xf32>
    %c0_72 = arith.constant 0 : index
    %c3_73 = arith.constant 3 : index
    %c2_74 = arith.constant 2 : index
    %170 = vector.load %arg2[%c0_72, %c3_73, %c2_74] : memref<1x20x136xf32, #tpu.memory_space<vmem>>, vector<1x16x128xf32>
    %171 = vector.shape_cast %170 : vector<1x16x128xf32> to vector<16x128xf32>
    %172 = vector.broadcast %30 : f32 to vector<16x128xf32>
    %173 = arith.mulf %171, %172 : vector<16x128xf32>
    %174 = arith.addf %158, %173 : vector<16x128xf32>
    %175 = vector.broadcast %11 : f32 to vector<16x128xf32>
    %176 = arith.mulf %171, %175 : vector<16x128xf32>
    %177 = arith.addf %145, %176 : vector<16x128xf32>
    %c3_75 = arith.constant 3 : index
    %c2_76 = arith.constant 2 : index
    %178 = vector.load %arg3[%c3_75, %c2_76] : memref<20x136xf32, #tpu.memory_space<vmem>>, vector<16x128xf32>
    %179 = arith.addf %171, %178 : vector<16x128xf32>
    %180 = arith.maximumf %148, %179 : vector<16x128xf32>
    %c0_77 = arith.constant 0 : index
    %c3_78 = arith.constant 3 : index
    %c3_79 = arith.constant 3 : index
    %181 = vector.load %arg2[%c0_77, %c3_78, %c3_79] : memref<1x20x136xf32, #tpu.memory_space<vmem>>, vector<1x16x128xf32>
    %182 = vector.shape_cast %181 : vector<1x16x128xf32> to vector<16x128xf32>
    %183 = vector.broadcast %31 : f32 to vector<16x128xf32>
    %184 = arith.mulf %182, %183 : vector<16x128xf32>
    %185 = arith.addf %163, %184 : vector<16x128xf32>
    %186 = vector.broadcast %12 : f32 to vector<16x128xf32>
    %187 = arith.mulf %182, %186 : vector<16x128xf32>
    %188 = arith.addf %166, %187 : vector<16x128xf32>
    %c3_80 = arith.constant 3 : index
    %c3_81 = arith.constant 3 : index
    %189 = vector.load %arg3[%c3_80, %c3_81] : memref<20x136xf32, #tpu.memory_space<vmem>>, vector<16x128xf32>
    %190 = arith.addf %182, %189 : vector<16x128xf32>
    %191 = arith.maximumf %169, %190 : vector<16x128xf32>
    %c0_82 = arith.constant 0 : index
    %c3_83 = arith.constant 3 : index
    %c4_84 = arith.constant 4 : index
    %192 = vector.load %arg2[%c0_82, %c3_83, %c4_84] : memref<1x20x136xf32, #tpu.memory_space<vmem>>, vector<1x16x128xf32>
    %193 = vector.shape_cast %192 : vector<1x16x128xf32> to vector<16x128xf32>
    %194 = vector.broadcast %32 : f32 to vector<16x128xf32>
    %195 = arith.mulf %193, %194 : vector<16x128xf32>
    %196 = arith.addf %174, %195 : vector<16x128xf32>
    %c0_85 = arith.constant 0 : index
    %c4_86 = arith.constant 4 : index
    %c0_87 = arith.constant 0 : index
    %197 = vector.load %arg2[%c0_85, %c4_86, %c0_87] : memref<1x20x136xf32, #tpu.memory_space<vmem>>, vector<1x16x128xf32>
    %198 = vector.shape_cast %197 : vector<1x16x128xf32> to vector<16x128xf32>
    %199 = vector.broadcast %33 : f32 to vector<16x128xf32>
    %200 = arith.mulf %198, %199 : vector<16x128xf32>
    %201 = arith.addf %185, %200 : vector<16x128xf32>
    %c0_88 = arith.constant 0 : index
    %c4_89 = arith.constant 4 : index
    %c1_90 = arith.constant 1 : index
    %202 = vector.load %arg2[%c0_88, %c4_89, %c1_90] : memref<1x20x136xf32, #tpu.memory_space<vmem>>, vector<1x16x128xf32>
    %203 = vector.shape_cast %202 : vector<1x16x128xf32> to vector<16x128xf32>
    %204 = vector.broadcast %34 : f32 to vector<16x128xf32>
    %205 = arith.mulf %203, %204 : vector<16x128xf32>
    %206 = arith.addf %196, %205 : vector<16x128xf32>
    %c0_91 = arith.constant 0 : index
    %c4_92 = arith.constant 4 : index
    %c2_93 = arith.constant 2 : index
    %207 = vector.load %arg2[%c0_91, %c4_92, %c2_93] : memref<1x20x136xf32, #tpu.memory_space<vmem>>, vector<1x16x128xf32>
    %208 = vector.shape_cast %207 : vector<1x16x128xf32> to vector<16x128xf32>
    %209 = vector.broadcast %35 : f32 to vector<16x128xf32>
    %210 = arith.mulf %208, %209 : vector<16x128xf32>
    %211 = arith.addf %201, %210 : vector<16x128xf32>
    %c0_94 = arith.constant 0 : index
    %c4_95 = arith.constant 4 : index
    %c3_96 = arith.constant 3 : index
    %212 = vector.load %arg2[%c0_94, %c4_95, %c3_96] : memref<1x20x136xf32, #tpu.memory_space<vmem>>, vector<1x16x128xf32>
    %213 = vector.shape_cast %212 : vector<1x16x128xf32> to vector<16x128xf32>
    %214 = vector.broadcast %36 : f32 to vector<16x128xf32>
    %215 = arith.mulf %213, %214 : vector<16x128xf32>
    %216 = arith.addf %206, %215 : vector<16x128xf32>
    %c0_97 = arith.constant 0 : index
    %c4_98 = arith.constant 4 : index
    %c4_99 = arith.constant 4 : index
    %217 = vector.load %arg2[%c0_97, %c4_98, %c4_99] : memref<1x20x136xf32, #tpu.memory_space<vmem>>, vector<1x16x128xf32>
    %218 = vector.shape_cast %217 : vector<1x16x128xf32> to vector<16x128xf32>
    %219 = vector.broadcast %37 : f32 to vector<16x128xf32>
    %220 = arith.mulf %218, %219 : vector<16x128xf32>
    %221 = arith.addf %211, %220 : vector<16x128xf32>
    %222 = arith.addf %188, %177 : vector<16x128xf32>
    %223 = vector.broadcast %2 : f32 to vector<16x128xf32>
    %224 = arith.addf %222, %223 : vector<16x128xf32>
    %cst_100 = arith.constant 0.000000e+00 : f32
    %225 = vector.broadcast %cst_100 : f32 to vector<16x128xf32>
    %226 = arith.maximumf %224, %225 : vector<16x128xf32>
    %c0_101 = arith.constant 0 : index
    %c1_102 = arith.constant 1 : index
    %c0_103 = arith.constant 0 : index
    %c0_104 = arith.constant 0 : index
    %227 = vector.load %arg4[%c0_101, %c1_102, %c0_103, %c0_104] : memref<1x4x16x128xf32, #tpu.memory_space<vmem>>, vector<1x1x16x128xf32>
    %228 = vector.shape_cast %227 : vector<1x1x16x128xf32> to vector<16x128xf32>
    %229 = vector.shape_cast %226 : vector<16x128xf32> to vector<1x1x16x128xf32>
    tpu.vector_store %arg4[%c0_101, %c1_102, %c0_103, %c0_104], %229 {strides = array<i32>} : memref<1x4x16x128xf32, #tpu.memory_space<vmem>>, vector<1x1x16x128xf32>,
    %230 = arith.addf %221, %216 : vector<16x128xf32>
    %231 = vector.broadcast %3 : f32 to vector<16x128xf32>
    %232 = arith.addf %230, %231 : vector<16x128xf32>
    %cst_105 = arith.constant 0.000000e+00 : f32
    %233 = vector.broadcast %cst_105 : f32 to vector<16x128xf32>
    %234 = arith.maximumf %232, %233 : vector<16x128xf32>
    %c0_106 = arith.constant 0 : index
    %c2_107 = arith.constant 2 : index
    %c0_108 = arith.constant 0 : index
    %c0_109 = arith.constant 0 : index
    %235 = vector.load %arg4[%c0_106, %c2_107, %c0_108, %c0_109] : memref<1x4x16x128xf32, #tpu.memory_space<vmem>>, vector<1x1x16x128xf32>
    %236 = vector.shape_cast %235 : vector<1x1x16x128xf32> to vector<16x128xf32>
    %237 = vector.shape_cast %234 : vector<16x128xf32> to vector<1x1x16x128xf32>
    tpu.vector_store %arg4[%c0_106, %c2_107, %c0_108, %c0_109], %237 {strides = array<i32>} : memref<1x4x16x128xf32, #tpu.memory_space<vmem>>, vector<1x1x16x128xf32>,
    %238 = arith.maximumf %191, %180 : vector<16x128xf32>
    %c0_110 = arith.constant 0 : index
    %c3_111 = arith.constant 3 : index
    %c0_112 = arith.constant 0 : index
    %c0_113 = arith.constant 0 : index
    %239 = vector.load %arg4[%c0_110, %c3_111, %c0_112, %c0_113] : memref<1x4x16x128xf32, #tpu.memory_space<vmem>>, vector<1x1x16x128xf32>
    %240 = vector.shape_cast %239 : vector<1x1x16x128xf32> to vector<16x128xf32>
    %241 = vector.shape_cast %238 : vector<16x128xf32> to vector<1x1x16x128xf32>
    tpu.vector_store %arg4[%c0_110, %c3_111, %c0_112, %c0_113], %241 {strides = array<i32>} : memref<1x4x16x128xf32, #tpu.memory_space<vmem>>, vector<1x1x16x128xf32>,
    return
  }
  func.func @transform_0(%arg0: i32) -> i32 {
    %c0_i32 = arith.constant 0 : i32
    %c0_i32_0 = arith.constant 0 : i32
    return %c0_i32 : i32
  }
  func.func @transform_1(%arg0: i32) -> (i32, i32, i32) {
    %c0_i32 = arith.constant 0 : i32
    %c0_i32_0 = arith.constant 0 : i32
    %c0_i32_1 = arith.constant 0 : i32
    return %arg0, %c0_i32, %c0_i32_0 : i32, i32, i32
  }
  func.func @transform_2(%arg0: i32) -> (i32, i32) {
    %c0_i32 = arith.constant 0 : i32
    %c0_i32_0 = arith.constant 0 : i32
    %c0_i32_1 = arith.constant 0 : i32
    return %c0_i32, %c0_i32_0 : i32, i32
  }
  func.func @transform_3(%arg0: i32) -> (i32, i32, i32, i32) {
    %c0_i32 = arith.constant 0 : i32
    %c0_i32_0 = arith.constant 0 : i32
    %c0_i32_1 = arith.constant 0 : i32
    %c0_i32_2 = arith.constant 0 : i32
    return %arg0, %c0_i32, %c0_i32_0, %c0_i32_1 : i32, i32, i32, i32
  }
}

</mosaic_0001>

<llo_original>
// kernel: tpu_custom_call.1
$region0: #{tpu_custom_call.1}
  #allocation0 [shape = 'u32[]', space=smem, size = 0x4, offset = 0x4, fixed_abs, tag = 'smem constant byte address 0x4 - core index']
  #allocation1 [shape = 'u32[144,128]{1,0:T(1,128)}', space=vmem, size = 0x12000, scoped, tag = 'internal scratch']
  %s0 = inlined_call_operand.vmem [shape: f32[38], index: 0, kind: input, shape index: {}]
  %s1 = inlined_call_operand.vmem [shape: f32[2,20,136], index: 1, kind: input, shape index: {}]
  %s2 = inlined_call_operand.vmem [shape: f32[20,136], index: 2, kind: input, shape index: {}]
  %s3 = inlined_call_operand.hbm [shape: f32[2,4,16,128], index: 3, kind: output, shape index: {}]
  %s4 = sld [smem:[#allocation0]]
  $region49: #{tpu_custom_call.1} parent=0
    _
  %s6 = ssub.s32 1, %s4
  %s7 = scalar_select 0, %s6, %s4
  $region1: #{tpu_custom_call.1} parent=0
    #allocation2 [shape = 'u8[512]{0}', space=smem, size = 0x200, scoped, tag = 'input window, operand 0, single buffered']
    #allocation3 [shape = 's32[2]{0}', space=sflag, size = 0x8, scoped, tag = 'scoped memory for tpu_custom_call.1']
    #allocation4 [shape = 's32[2]{0}', space=sflag, size = 0x8, scoped, tag = 'scoped memory for tpu_custom_call.1']
    #allocation5 [shape = 'u8[65536]{0}', space=vmem, size = 0x10000, scoped, tag = 'output window, operand 0']
    %8 = vsyncpa [#allocation4], 0
    %9 = vsyncpa [#allocation3], 0
    %s10 = scalar_lea.sflag [#allocation3], 1
    %11 = vsyncpa %s10, 0
    loop: start=0, step=1, limit=4
    $region2: #{tpu_custom_call.1} parent=1 // loop_pre_header
      _
    $region3: #{tpu_custom_call.1} parent=1 // loop_header
      %s13 = sphi 0, %s17
      %p14 = scmp.ge.s32.totalorder %s13, 4
      %s21 = sphi 0, %s21
      %s23 = sphi 0, %s21
      %s24 = sphi 0, %s23
      %s38 = sphi 0, %s24
      %s44 = sphi 0, %s46
      %s47 = sphi 0, %s44
      %s48 = sphi 0, %s47
      %s64 = sphi 0, %s48
      %s68 = sphi 0, %s68
      %s70 = sphi 0, %s68
      %s71 = sphi 0, %s70
      %s85 = sphi 0, %s71
      %s91 = sphi 0, %s93
      %s94 = sphi 0, %s91
      %s95 = sphi 0, %s94
      %s111 = sphi 0, %s95
    $region4: #{tpu_custom_call.1} parent=1 // loop_header_branch
      %16 = sbr.rel (%p14) target = $region8
    $region5: #{tpu_custom_call.1} parent=1 // loop_body
      %s18 = ssub.s32 %s13, 1
      %s19 = ssub.s32 %s13, 2
      %s20 = sadd.s32 %s13, 1
      %s22 = sadd.s32 %s21, 1
      %p25 = scmp.eq.s32.totalorder %s13, 1
      %p26 = scmp.ne.s32.totalorder %s21, %s23
      %p27 = scmp.eq.s32.totalorder %s13, 0
      %p28 = por %p26, %p27
      %p29 = scmp.ne.s32.totalorder %s21, %s23
      %p30 = scmp.eq.s32.totalorder %s18, 1
      %p31 = por %p29, %p30
      %p32 = scmp.ne.s32.totalorder %s23, %s24
      %p33 = scmp.eq.s32.totalorder %s18, 0
      %p34 = por %p32, %p33
      %p35 = scmp.ne.s32.totalorder %s23, %s24
      %p36 = scmp.eq.s32.totalorder %s19, 1
      %p37 = por %p35, %p36
      %p39 = scmp.ne.s32.totalorder %s24, %s38
      %p40 = scmp.eq.s32.totalorder %s19, 0
      %p41 = por %p39, %p40
      %s42 = ssub.s32 %s13, %s20
      %p43 = scmp.eq.s32.totalorder %s42, 0
      %s45 = sadd.s32 %s44, 1
      %s46 = scalar_select %p43, %s44, %s45
      %p49 = pneg %p43
      %p50 = scmp.eq.s32.totalorder %s13, 1
      %p51 = por %p49, %p50
      %p52 = scmp.ne.s32.totalorder %s44, %s47
      %p53 = scmp.eq.s32.totalorder %s13, 0
      %p54 = por %p52, %p53
      %p55 = scmp.ne.s32.totalorder %s44, %s47
      %p56 = scmp.eq.s32.totalorder %s18, 1
      %p57 = por %p55, %p56
      %p58 = scmp.ne.s32.totalorder %s47, %s48
      %p59 = scmp.eq.s32.totalorder %s18, 0
      %p60 = por %p58, %p59
      %p61 = scmp.ne.s32.totalorder %s47, %s48
      %p62 = scmp.eq.s32.totalorder %s19, 1
      %p63 = por %p61, %p62
      %p65 = scmp.ne.s32.totalorder %s48, %s64
      %p66 = scmp.eq.s32.totalorder %s19, 0
      %p67 = por %p65, %p66
      %s69 = sadd.s32 %s68, 1
      %p72 = scmp.eq.s32.totalorder %s13, 1
      %p73 = scmp.ne.s32.totalorder %s68, %s70
      %p74 = scmp.eq.s32.totalorder %s13, 0
      %p75 = por %p73, %p74
      %p76 = scmp.ne.s32.totalorder %s68, %s70
      %p77 = scmp.eq.s32.totalorder %s18, 1
      %p78 = por %p76, %p77
      %p79 = scmp.ne.s32.totalorder %s70, %s71
      %p80 = scmp.eq.s32.totalorder %s18, 0
      %p81 = por %p79, %p80
      %p82 = scmp.ne.s32.totalorder %s70, %s71
      %p83 = scmp.eq.s32.totalorder %s19, 1
      %p84 = por %p82, %p83
      %p86 = scmp.ne.s32.totalorder %s71, %s85
      %p87 = scmp.eq.s32.totalorder %s19, 0
      %p88 = por %p86, %p87
      %s89 = ssub.s32 %s13, %s20
      %p90 = scmp.eq.s32.totalorder %s89, 0
      %s92 = sadd.s32 %s91, 1
      %s93 = scalar_select %p90, %s91, %s92
      %p96 = pneg %p90
      %p97 = scmp.eq.s32.totalorder %s13, 1
      %p98 = por %p96, %p97
      %p99 = scmp.ne.s32.totalorder %s91, %s94
      %p100 = scmp.eq.s32.totalorder %s13, 0
      %p101 = por %p99, %p100
      %p102 = scmp.ne.s32.totalorder %s91, %s94
      %p103 = scmp.eq.s32.totalorder %s18, 1
      %p104 = por %p102, %p103
      %p105 = scmp.ne.s32.totalorder %s94, %s95
      %p106 = scmp.eq.s32.totalorder %s18, 0
      %p107 = por %p105, %p106
      %p108 = scmp.ne.s32.totalorder %s94, %s95
      %p109 = scmp.eq.s32.totalorder %s19, 1
      %p110 = por %p108, %p109
      %p112 = scmp.ne.s32.totalorder %s95, %s111
      %p113 = scmp.eq.s32.totalorder %s19, 0
      %p114 = por %p112, %p113
      %p115 = scmp.le.s32.totalorder 1, %s13
      %p116 = scmp.lt.s32.totalorder %s13, 3
      %p117 = pnand %p115, %p116
      %p118 = pneg %p117
      // Predicated region
      $region9: #{tpu_custom_call.1} parent=5 // pred_check
        _
      $region10: #{tpu_custom_call.1} parent=5 // pred_check_branch
        %120 = sbr.rel (%p117) target = $region12
      $region11: #{tpu_custom_call.1} parent=5 // pred_region
        %s121 = ssub.s32 %s13, 1
        // Predicated region
        $region13: #{tpu_custom_call.1} parent=11 // pred_check
          %p122 = pneg %p34
        $region14: #{tpu_custom_call.1} parent=11 // pred_check_branch
          %124 = sbr.rel (%p122) target = $region16
        $region15: #{tpu_custom_call.1} parent=11 // pred_region
          %s126 = ssub.s32 16, 16
          %127 = vsyncadd [#allocation4], %s126
          %s129 = sshll.u32 %s0, 4
          %s130 = int_to_ptr.vmem [resolvable:$true] %s129
          %132 = dma.vmem_to_smem %s130, 16, [#allocation2], [#allocation4]
        $region16: #{tpu_custom_call.1} parent=11 // pred_fallthru
          _
        // Predicated region
        $region17: #{tpu_custom_call.1} parent=11 // pred_check
          %p133 = pneg %p81
        $region18: #{tpu_custom_call.1} parent=11 // pred_check_branch
          %135 = sbr.rel (%p133) target = $region20
        $region19: #{tpu_custom_call.1} parent=11 // pred_region
          _
        $region20: #{tpu_custom_call.1} parent=11 // pred_fallthru
          _
      $region12: #{tpu_custom_call.1} parent=5 // pred_fallthru
        _
      %p136 = scmp.lt.s32.totalorder %s13, 2
      // Predicated region
      $region21: #{tpu_custom_call.1} parent=5 // pred_check
        %p137 = pneg %p136
      $region22: #{tpu_custom_call.1} parent=5 // pred_check_branch
        %139 = sbr.rel (%p137) target = $region24
      $region23: #{tpu_custom_call.1} parent=5 // pred_region
        // Predicated region
        $region25: #{tpu_custom_call.1} parent=23 // pred_check
          %p140 = pneg %p54
        $region26: #{tpu_custom_call.1} parent=23 // pred_check_branch
          %142 = sbr.rel (%p140) target = $region28
        $region27: #{tpu_custom_call.1} parent=23 // pred_region
          %p143 = scmp.lt.s32.totalorder %s13, 1
          %s144 = scalar_select %p143, %s13, 1
          %s145 = smul.addr %s144, 6
          %s146 = smul.addr %s145, 8
          %s147 = scalar_lea.vmem %s1, %s146
        $region28: #{tpu_custom_call.1} parent=23 // pred_fallthru
          _
      $region24: #{tpu_custom_call.1} parent=5 // pred_fallthru
        _
      %p148 = scmp.le.s32.totalorder 1, %s13
      %p149 = scmp.lt.s32.totalorder %s13, 3
      %p150 = pnand %p148, %p149
      %p151 = pneg %p150
      // Predicated region
      $region29: #{tpu_custom_call.1} parent=5 // pred_check
        _
      $region30: #{tpu_custom_call.1} parent=5 // pred_check_branch
        %153 = sbr.rel (%p150) target = $region32
      $region31: #{tpu_custom_call.1} parent=5 // pred_region
        %s154 = ssub.s32 %s13, 1
        // Predicated region
        $region33: #{tpu_custom_call.1} parent=31 // pred_check
          %p155 = pneg %p34
        $region34: #{tpu_custom_call.1} parent=31 // pred_check_branch
          %157 = sbr.rel (%p155) target = $region36
        $region35: #{tpu_custom_call.1} parent=31 // pred_region
          %158 = dma.done [#allocation4], 16
        $region36: #{tpu_custom_call.1} parent=31 // pred_fallthru
          _
        %159 = sfence
        %p160 = pneg %p34
        %p161 = pneg %p31
        %p162 = scmp.lt.s32.totalorder %s18, 1
        %s163 = scalar_select %p162, %s18, 1
        %s164 = smul.addr %s163, 6
        %s165 = smul.addr %s164, 8
        %s166 = scalar_lea.vmem %s1, %s165
        %p167 = pneg %p60
        %p168 = pneg %p57
        %p169 = pneg %p81
        %p170 = pneg %p78
        %p171 = pneg %p107
        %p172 = pneg %p104
        %s173 = sand.u32 %s94, 1
        %s174 = scalar_lea.sflag [#allocation3], %s173
        %s175 = sand.u32 %s94, 1
        %s176 = smul.addr %s175, 64
        %s177 = scalar_lea.vmem [#allocation5], %s176
        %p178 = scmp.lt.s32.totalorder %s18, 1
        %s179 = scalar_select %p178, %s18, 1
        %s180 = smul.addr %s179, 6
        %s181 = smul.addr %s180, 8
        %s182 = scalar_lea.vmem %s1, %s181
        %s183 = sld [smem:[#allocation2]]
        %s184 = sld [smem:[#allocation2 + $0x1]]
        %s185 = sld [smem:[#allocation2 + $0x2]]
        %s186 = sld [smem:[#allocation2 + $0x3]]
        %s187 = sld [smem:[#allocation2 + $0x4]]
        %s188 = sld [smem:[#allocation2 + $0x5]]
        %s189 = sld [smem:[#allocation2 + $0x6]]
        %s190 = sld [smem:[#allocation2 + $0x7]]
        %s191 = sld [smem:[#allocation2 + $0x8]]
        %s192 = sld [smem:[#allocation2 + $0x9]]
        %s193 = sld [smem:[#allocation2 + $0xa]]
        %s194 = sld [smem:[#allocation2 + $0xb]]
        %s195 = sld [smem:[#allocation2 + $0xc]]
        %s196 = sld [smem:[#allocation2 + $0xd]]
        %s197 = sld [smem:[#allocation2 + $0xe]]
        %s198 = sld [smem:[#allocation2 + $0xf]]
        %s199 = sld [smem:[#allocation2 + $0x10]]
        %s200 = sld [smem:[#allocation2 + $0x11]]
        %s201 = sld [smem:[#allocation2 + $0x12]]
        %s202 = sld [smem:[#allocation2 + $0x13]]
        %s203 = sld [smem:[#allocation2 + $0x14]]
        %s204 = sld [smem:[#allocation2 + $0x15]]
        %s205 = sld [smem:[#allocation2 + $0x16]]
        %s206 = sld [smem:[#allocation2 + $0x17]]
        %s207 = sld [smem:[#allocation2 + $0x18]]
        %s208 = sld [smem:[#allocation2 + $0x19]]
        %s209 = sld [smem:[#allocation2 + $0x1a]]
        %s210 = sld [smem:[#allocation2 + $0x1b]]
        %s211 = sld [smem:[#allocation2 + $0x1c]]
        %s212 = sld [smem:[#allocation2 + $0x1d]]
        %s213 = sld [smem:[#allocation2 + $0x1e]]
        %s214 = sld [smem:[#allocation2 + $0x1f]]
        %s215 = sld [smem:[#allocation2 + $0x20]]
        %s216 = sld [smem:[#allocation2 + $0x21]]
        %s217 = sld [smem:[#allocation2 + $0x22]]
        %s218 = sld [smem:[#allocation2 + $0x23]]
        %s219 = sld [smem:[#allocation2 + $0x24]]
        %s220 = sld [smem:[#allocation2 + $0x25]]
        %v221 = vld [vmem:[%s182] sm:$0xfc]
        %v222 = vld [vmem:[%s182 + $0x8] sm:$0xfc]
        %v223 = vld [vmem:[%s182 + $0x10] sm:$0xff]
        %v224 = vld [vmem:[%s182 + $0x18] sm:$0xff]
        %v225 = vld [vmem:[%s182 + $0x20] sm:$0x3]
        %v226 = vld [vmem:[%s182 + $0x28] sm:$0x3]
        %v227 = vstv %s183
        %v228 = vmul.f32 %v221, %v227
        %v229 = vmul.f32 %v222, %v227
        %v230 = vmul.f32 %v223, %v227
        %v231 = vmul.f32 %v224, %v227
        %v232 = vmul.f32 %v225, %v227
        %v233 = vmul.f32 %v226, %v227
        %v234 = vstv %s184
        %v235 = vadd.f32 %v228, %v234
        %v236 = vadd.f32 %v229, %v234
        %v237 = vadd.f32 %v230, %v234
        %v238 = vadd.f32 %v231, %v234
        %v239 = vadd.f32 %v232, %v234
        %v240 = vadd.f32 %v233, %v234
        %v241 = vmax.f32 %v235, 0.0
        %v242 = vmax.f32 %v236, 0.0
        %v243 = vmax.f32 %v237, 0.0
        %v244 = vmax.f32 %v238, 0.0
        %v245 = vmax.f32 %v239, 0.0
        %v246 = vmax.f32 %v240, 0.0
        %253 = vrot.lane.b32.xlu0 %v241, 126
        %v254 = vpop.permute.xlu0 %253
        %255 = vrot.lane.b32.xlu0 %v242, 126
        %v256 = vpop.permute.xlu0 %255
        %257 = vrot.lane.b32.xlu0 %v243, 126
        %v258 = vpop.permute.xlu0 %257
        %259 = vrot.lane.b32.xlu0 %v244, 126
        %v260 = vpop.permute.xlu0 %259
        %261 = vrot.lane.b32.xlu0 %v245, 126
        %v262 = vpop.permute.xlu0 %261
        %263 = vrot.lane.b32.xlu0 %v246, 126
        %v264 = vpop.permute.xlu0 %263
        %vm265 = vcmask 1031168
        %v266 = vsel %vm265, %v254, %v256
        %v267 = vsel %vm265, %v258, %v260
        %v268 = vsel %vm265, %v262, %v264
        %272 = vst [vmem:[%s177 - $0x2] sm:$0xfc] %v266
        %273 = vst [vmem:[%s177 + $0x6] sm:$0xff] %v267
        %274 = vst [vmem:[%s177 + $0xe] sm:$0x3] %v268
        %v275 = vld [vmem:[%s182] sm:$0xff]
        %v276 = vld [vmem:[%s182 + $0x10] sm:$0xff]
        %v277 = vstv %s196
        %v278 = vmul.f32 %v275, %v277
        %v279 = vmul.f32 %v276, %v277
        %v280 = vld [vmem:[%s182 + $0x8] sm:$0xff]
        %v281 = vld [vmem:[%s182 + $0x18] sm:$0xff]
        %v282 = vstv %s197
        %v283 = vmul.f32 %v275, %v282
        %v284 = vmul.f32 %v280, %v282
        %v285 = vmul.f32 %v276, %v282
        %v286 = vmul.f32 %v281, %v282
        %v287 = vstv %s198
        %v288 = vmul.f32 %v275, %v287
        %v289 = vmul.f32 %v280, %v287
        %v290 = vmul.f32 %v276, %v287
        %v291 = vmul.f32 %v281, %v287
        %296 = vrot.lane.b32.xlu0 %v288, 126
        %v297 = vpop.permute.xlu0 %296
        %298 = vrot.lane.b32.xlu0 %v289, 126
        %v299 = vpop.permute.xlu0 %298
        %300 = vrot.lane.b32.xlu0 %v290, 126
        %v301 = vpop.permute.xlu0 %300
        %302 = vrot.lane.b32.xlu0 %v291, 126
        %v303 = vpop.permute.xlu0 %302
        %v304 = vsel %vm265, %v297, %v299
        %v305 = vsel %vm265, %v301, %v303
        %v308 = vadd.f32 %v278, %v304
        %v309 = vadd.f32 %v279, %v305
        %v310 = vstv %s199
        %v311 = vmul.f32 %v275, %v310
        %v312 = vmul.f32 %v280, %v310
        %v313 = vmul.f32 %v276, %v310
        %v314 = vmul.f32 %v281, %v310
        %319 = vrot.lane.b32.xlu0 %v311, 126
        %v320 = vpop.permute.xlu0 %319
        %321 = vrot.lane.b32.xlu0 %v312, 126
        %v322 = vpop.permute.xlu0 %321
        %323 = vrot.lane.b32.xlu0 %v313, 126
        %v324 = vpop.permute.xlu0 %323
        %325 = vrot.lane.b32.xlu0 %v314, 126
        %v326 = vpop.permute.xlu0 %325
        %v327 = vsel %vm265, %v320, %v322
        %v328 = vsel %vm265, %v324, %v326
        %v333 = vadd.f32 %v283, %v327
        %v334 = vadd.f32 %v284, %v322
        %v335 = vadd.f32 %v285, %v328
        %v336 = vadd.f32 %v286, %v326
        %v337 = vstv %s200
        %v338 = vmul.f32 %v275, %v337
        %v339 = vmul.f32 %v280, %v337
        %v340 = vmul.f32 %v276, %v337
        %v341 = vmul.f32 %v281, %v337
        %346 = vrot.lane.b32.xlu0 %v338, 124
        %v347 = vpop.permute.xlu0 %346
        %348 = vrot.lane.b32.xlu0 %v339, 124
        %v349 = vpop.permute.xlu0 %348
        %350 = vrot.lane.b32.xlu0 %v340, 124
        %v351 = vpop.permute.xlu0 %350
        %352 = vrot.lane.b32.xlu0 %v341, 124
        %v353 = vpop.permute.xlu0 %352
        %vm354 = vcmask 1014784
        %v355 = vsel %vm354, %v347, %v349
        %v356 = vsel %vm354, %v351, %v353
        %v359 = vadd.f32 %v308, %v355
        %v360 = vadd.f32 %v309, %v356
        %v361 = vld [vmem:[%s182] sm:$0xfe]
        %v362 = vld [vmem:[%s182 + $0x20] sm:$0x1]
        %v363 = vstv %s201
        %v364 = vmul.f32 %v361, %v363
        %v365 = vmul.f32 %v276, %v363
        %v366 = vmul.f32 %v362, %v363
        %vm370 = vcmask 1046528
        %v371 = vrot.slane %v364, 1
        %v372 = vrot.slane %v365, 1
        %v373 = vsel %vm370, %v371, %v372
        %v374 = vrot.slane %v366, 1
        %v375 = vsel %vm370, %v372, %v374
        %376 = vrot.lane.b32.xlu0 %v373, 1
        %v377 = vpop.permute.xlu0 %376
        %378 = vrot.lane.b32.xlu0 %v375, 1
        %v379 = vpop.permute.xlu0 %378
        %v382 = vadd.f32 %v333, %v377
        %v383 = vadd.f32 %v334, %v377
        %v384 = vadd.f32 %v335, %v379
        %v385 = vadd.f32 %v336, %v379
        %v386 = vld [vmem:[%s182 + $0x8] sm:$0xfe]
        %v387 = vld [vmem:[%s182 + $0x28] sm:$0x1]
        %v388 = vstv %s202
        %v389 = vmul.f32 %v361, %v388
        %v390 = vmul.f32 %v386, %v388
        %v391 = vmul.f32 %v276, %v388
        %v392 = vmul.f32 %v281, %v388
        %v393 = vmul.f32 %v362, %v388
        %v394 = vmul.f32 %v387, %v388
        %v401 = vrot.slane %v389, 1
        %v402 = vrot.slane %v391, 1
        %v403 = vsel %vm370, %v401, %v402
        %v404 = vrot.slane %v390, 1
        %v405 = vrot.slane %v392, 1
        %v406 = vsel %vm370, %v404, %v405
        %v407 = vrot.slane %v393, 1
        %v408 = vsel %vm370, %v402, %v407
        %v409 = vrot.slane %v394, 1
        %v410 = vsel %vm370, %v405, %v409
        %411 = vrot.lane.b32.xlu0 %v403, 127
        %v412 = vpop.permute.xlu0 %411
        %413 = vrot.lane.b32.xlu0 %v406, 127
        %v414 = vpop.permute.xlu0 %413
        %415 = vrot.lane.b32.xlu0 %v408, 127
        %v416 = vpop.permute.xlu0 %415
        %417 = vrot.lane.b32.xlu0 %v410, 127
        %v418 = vpop.permute.xlu0 %417
        %vm419 = vcmask 1039360
        %v420 = vsel %vm419, %v412, %v414
        %v421 = vsel %vm419, %v416, %v418
        %v424 = vadd.f32 %v359, %v420
        %v425 = vadd.f32 %v360, %v421
        %v426 = vstv %s187
        %v427 = vmul.f32 %v361, %v426
        %v428 = vmul.f32 %v386, %v426
        %v429 = vmul.f32 %v276, %v426
        %v430 = vmul.f32 %v281, %v426
        %v431 = vmul.f32 %v362, %v426
        %v432 = vmul.f32 %v387, %v426
        %v433 = vld [vmem:[%s2] sm:$0xfe]
        %v434 = vld [vmem:[%s2 + $0x8] sm:$0xfe]
        %v435 = vld [vmem:[%s2 + $0x10] sm:$0xff]
        %v436 = vld [vmem:[%s2 + $0x18] sm:$0xff]
        %v437 = vld [vmem:[%s2 + $0x20] sm:$0x1]
        %v438 = vld [vmem:[%s2 + $0x28] sm:$0x1]
        %v439 = vadd.f32 %v361, %v433
        %v440 = vadd.f32 %v386, %v434
        %v441 = vadd.f32 %v276, %v435
        %v442 = vadd.f32 %v281, %v436
        %v443 = vadd.f32 %v362, %v437
        %v444 = vadd.f32 %v387, %v438
        %v445 = vstv %s203
        %v446 = vmul.f32 %v361, %v445
        %v447 = vmul.f32 %v386, %v445
        %v448 = vmul.f32 %v276, %v445
        %v449 = vmul.f32 %v281, %v445
        %v450 = vmul.f32 %v362, %v445
        %v451 = vmul.f32 %v387, %v445
        %v458 = vrot.slane %v446, 1
        %v459 = vrot.slane %v448, 1
        %v460 = vsel %vm370, %v458, %v459
        %v461 = vrot.slane %v447, 1
        %v462 = vrot.slane %v449, 1
        %v463 = vsel %vm370, %v461, %v462
        %v464 = vrot.slane %v450, 1
        %v465 = vsel %vm370, %v459, %v464
        %v466 = vrot.slane %v451, 1
        %v467 = vsel %vm370, %v462, %v466
        %468 = vrot.lane.b32.xlu0 %v460, 127
        %v469 = vpop.permute.xlu0 %468
        %470 = vrot.lane.b32.xlu0 %v463, 127
        %v471 = vpop.permute.xlu0 %470
        %472 = vrot.lane.b32.xlu0 %v465, 127
        %v473 = vpop.permute.xlu0 %472
        %474 = vrot.lane.b32.xlu0 %v467, 127
        %v475 = vpop.permute.xlu0 %474
        %v476 = vsel %vm419, %v469, %v471
        %v477 = vsel %vm419, %v473, %v475
        %v482 = vadd.f32 %v382, %v476
        %v483 = vadd.f32 %v383, %v471
        %v484 = vadd.f32 %v384, %v477
        %v485 = vadd.f32 %v385, %v475
        %v486 = vstv %s188
        %v487 = vmul.f32 %v361, %v486
        %v488 = vmul.f32 %v386, %v486
        %v489 = vmul.f32 %v276, %v486
        %v490 = vmul.f32 %v281, %v486
        %v491 = vmul.f32 %v362, %v486
        %v492 = vmul.f32 %v387, %v486
        %v493 = vstv %s204
        %v494 = vmul.f32 %v361, %v493
        %v495 = vmul.f32 %v386, %v493
        %v496 = vmul.f32 %v276, %v493
        %v497 = vmul.f32 %v281, %v493
        %v498 = vmul.f32 %v362, %v493
        %v499 = vmul.f32 %v387, %v493
        %v506 = vrot.slane %v494, 1
        %v507 = vrot.slane %v496, 1
        %v508 = vsel %vm370, %v506, %v507
        %v509 = vrot.slane %v495, 1
        %v510 = vrot.slane %v497, 1
        %v511 = vsel %vm370, %v509, %v510
        %v512 = vrot.slane %v498, 1
        %v513 = vsel %vm370, %v507, %v512
        %v514 = vrot.slane %v499, 1
        %v515 = vsel %vm370, %v510, %v514
        %516 = vrot.lane.b32.xlu0 %v508, 125
        %v517 = vpop.permute.xlu0 %516
        %518 = vrot.lane.b32.xlu0 %v511, 125
        %v519 = vpop.permute.xlu0 %518
        %520 = vrot.lane.b32.xlu0 %v513, 125
        %v521 = vpop.permute.xlu0 %520
        %522 = vrot.lane.b32.xlu0 %v515, 125
        %v523 = vpop.permute.xlu0 %522
        %vm524 = vcmask 1022976
        %v525 = vsel %vm524, %v517, %v519
        %v526 = vsel %vm524, %v521, %v523
        %v529 = vadd.f32 %v424, %v525
        %v530 = vadd.f32 %v425, %v526
        %v531 = vstv %s189
        %v532 = vmul.f32 %v361, %v531
        %v533 = vmul.f32 %v386, %v531
        %v534 = vmul.f32 %v276, %v531
        %v535 = vmul.f32 %v281, %v531
        %v536 = vmul.f32 %v362, %v531
        %v537 = vmul.f32 %v387, %v531
        %544 = vrot.lane.b32.xlu0 %v532, 126
        %v545 = vpop.permute.xlu0 %544
        %546 = vrot.lane.b32.xlu0 %v533, 126
        %v547 = vpop.permute.xlu0 %546
        %548 = vrot.lane.b32.xlu0 %v534, 126
        %v549 = vpop.permute.xlu0 %548
        %550 = vrot.lane.b32.xlu0 %v535, 126
        %v551 = vpop.permute.xlu0 %550
        %552 = vrot.lane.b32.xlu0 %v536, 126
        %v553 = vpop.permute.xlu0 %552
        %554 = vrot.lane.b32.xlu0 %v537, 126
        %v555 = vpop.permute.xlu0 %554
        %v556 = vsel %vm265, %v545, %v547
        %v557 = vsel %vm265, %v549, %v551
        %v558 = vsel %vm265, %v553, %v555
        %v565 = vadd.f32 %v427, %v556
        %v566 = vadd.f32 %v428, %v547
        %v567 = vadd.f32 %v429, %v557
        %v568 = vadd.f32 %v430, %v551
        %v569 = vadd.f32 %v431, %v558
        %v570 = vadd.f32 %v432, %v555
        %577 = vrot.lane.b32.xlu0 %v439, 126
        %v578 = vpop.permute.xlu0 %577
        %579 = vrot.lane.b32.xlu0 %v440, 126
        %v580 = vpop.permute.xlu0 %579
        %581 = vrot.lane.b32.xlu0 %v441, 126
        %v582 = vpop.permute.xlu0 %581
        %583 = vrot.lane.b32.xlu0 %v442, 126
        %v584 = vpop.permute.xlu0 %583
        %585 = vrot.lane.b32.xlu0 %v443, 126
        %v586 = vpop.permute.xlu0 %585
        %587 = vrot.lane.b32.xlu0 %v444, 126
        %v588 = vpop.permute.xlu0 %587
        %v589 = vsel %vm265, %v578, %v580
        %v590 = vsel %vm265, %v582, %v584
        %v591 = vsel %vm265, %v586, %v588
        %v598 = vmax.f32 %v439, %v589
        %v599 = vmax.f32 %v440, %v580
        %v600 = vmax.f32 %v441, %v590
        %v601 = vmax.f32 %v442, %v584
        %v602 = vmax.f32 %v443, %v591
        %v603 = vmax.f32 %v444, %v588
        %v604 = vstv %s205
        %v605 = vmul.f32 %v361, %v604
        %v606 = vmul.f32 %v386, %v604
        %v607 = vmul.f32 %v276, %v604
        %v608 = vmul.f32 %v281, %v604
        %v609 = vmul.f32 %v362, %v604
        %v610 = vmul.f32 %v387, %v604
        %v617 = vrot.slane %v605, 1
        %v618 = vrot.slane %v607, 1
        %v619 = vsel %vm370, %v617, %v618
        %v620 = vrot.slane %v606, 1
        %v621 = vrot.slane %v608, 1
        %v622 = vsel %vm370, %v620, %v621
        %v623 = vrot.slane %v609, 1
        %v624 = vsel %vm370, %v618, %v623
        %v625 = vrot.slane %v610, 1
        %v626 = vsel %vm370, %v621, %v625
        %627 = vrot.lane.b32.xlu0 %v619, 125
        %v628 = vpop.permute.xlu0 %627
        %629 = vrot.lane.b32.xlu0 %v622, 125
        %v630 = vpop.permute.xlu0 %629
        %631 = vrot.lane.b32.xlu0 %v624, 125
        %v632 = vpop.permute.xlu0 %631
        %633 = vrot.lane.b32.xlu0 %v626, 125
        %v634 = vpop.permute.xlu0 %633
        %v635 = vsel %vm524, %v628, %v630
        %v636 = vsel %vm524, %v632, %v634
        %v641 = vadd.f32 %v482, %v635
        %v642 = vadd.f32 %v483, %v630
        %v643 = vadd.f32 %v484, %v636
        %v644 = vadd.f32 %v485, %v634
        %v645 = vld [vmem:[%s182] sm:$0xfc]
        %v646 = vld [vmem:[%s182 + $0x20] sm:$0x3]
        %v647 = vstv %s206
        %v648 = vmul.f32 %v645, %v647
        %v649 = vmul.f32 %v276, %v647
        %v650 = vmul.f32 %v646, %v647
        %vm654 = vcmask 1045504
        %v655 = vrot.slane %v648, 2
        %v656 = vrot.slane %v649, 2
        %v657 = vsel %vm654, %v655, %v656
        %v658 = vrot.slane %v650, 2
        %v659 = vsel %vm654, %v656, %v658
        %v662 = vadd.f32 %v529, %v657
        %v663 = vadd.f32 %v530, %v659
        %v664 = vld [vmem:[%s182 + $0x8] sm:$0xfc]
        %v665 = vld [vmem:[%s182 + $0x28] sm:$0x3]
        %v666 = vstv %s207
        %v667 = vmul.f32 %v645, %v666
        %v668 = vmul.f32 %v664, %v666
        %v669 = vmul.f32 %v276, %v666
        %v670 = vmul.f32 %v281, %v666
        %v671 = vmul.f32 %v646, %v666
        %v672 = vmul.f32 %v665, %v666
        %v679 = vrot.slane %v667, 2
        %v680 = vrot.slane %v669, 2
        %v681 = vsel %vm654, %v679, %v680
        %v682 = vrot.slane %v668, 2
        %v683 = vrot.slane %v670, 2
        %v684 = vsel %vm654, %v682, %v683
        %v685 = vrot.slane %v671, 2
        %v686 = vsel %vm654, %v680, %v685
        %v687 = vrot.slane %v672, 2
        %v688 = vsel %vm654, %v683, %v687
        %v693 = vadd.f32 %v641, %v681
        %v694 = vadd.f32 %v642, %v684
        %v695 = vadd.f32 %v643, %v686
        %v696 = vadd.f32 %v644, %v688
        %v697 = vstv %s190
        %v698 = vmul.f32 %v645, %v697
        %v699 = vmul.f32 %v664, %v697
        %v700 = vmul.f32 %v276, %v697
        %v701 = vmul.f32 %v281, %v697
        %v702 = vmul.f32 %v646, %v697
        %v703 = vmul.f32 %v665, %v697
        %v710 = vrot.slane %v698, 1
        %v711 = vrot.slane %v700, 1
        %v712 = vsel %vm370, %v710, %v711
        %v713 = vrot.slane %v699, 1
        %v714 = vrot.slane %v701, 1
        %v715 = vsel %vm370, %v713, %v714
        %v716 = vrot.slane %v702, 1
        %v717 = vsel %vm370, %v711, %v716
        %v718 = vrot.slane %v703, 1
        %v719 = vsel %vm370, %v714, %v718
        %720 = vrot.lane.b32.xlu0 %v712, 1
        %v721 = vpop.permute.xlu0 %720
        %722 = vrot.lane.b32.xlu0 %v715, 1
        %v723 = vpop.permute.xlu0 %722
        %724 = vrot.lane.b32.xlu0 %v717, 1
        %v725 = vpop.permute.xlu0 %724
        %726 = vrot.lane.b32.xlu0 %v719, 1
        %v727 = vpop.permute.xlu0 %726
        %728 = vrot.lane.b32.xlu0 %v716, 1
        %v729 = vpop.permute.xlu0 %728
        %730 = vrot.lane.b32.xlu0 %v718, 1
        %v731 = vpop.permute.xlu0 %730
        %vm732 = vcmask 7168
        %v733 = vsel %vm732, %v721, %v723
        %v734 = vsel %vm732, %v725, %v727
        %v735 = vsel %vm732, %v729, %v731
        %v742 = vadd.f32 %v487, %v721
        %v743 = vadd.f32 %v488, %v733
        %v744 = vadd.f32 %v489, %v725
        %v745 = vadd.f32 %v490, %v734
        %v746 = vadd.f32 %v491, %v729
        %v747 = vadd.f32 %v492, %v735
        %v748 = vld [vmem:[%s2] sm:$0xfc]
        %v749 = vld [vmem:[%s2 + $0x8] sm:$0xfc]
        %v750 = vld [vmem:[%s2 + $0x20] sm:$0x3]
        %v751 = vld [vmem:[%s2 + $0x28] sm:$0x3]
        %v752 = vadd.f32 %v645, %v748
        %v753 = vadd.f32 %v664, %v749
        %v754 = vadd.f32 %v646, %v750
        %v755 = vadd.f32 %v665, %v751
        %v760 = vrot.slane %v752, 1
        %v761 = vrot.slane %v441, 1
        %v762 = vsel %vm370, %v760, %v761
        %v763 = vrot.slane %v753, 1
        %v764 = vrot.slane %v442, 1
        %v765 = vsel %vm370, %v763, %v764
        %v766 = vrot.slane %v754, 1
        %v767 = vsel %vm370, %v761, %v766
        %v768 = vrot.slane %v755, 1
        %v769 = vsel %vm370, %v764, %v768
        %770 = vrot.lane.b32.xlu0 %v762, 1
        %v771 = vpop.permute.xlu0 %770
        %772 = vrot.lane.b32.xlu0 %v765, 1
        %v773 = vpop.permute.xlu0 %772
        %774 = vrot.lane.b32.xlu0 %v767, 1
        %v775 = vpop.permute.xlu0 %774
        %776 = vrot.lane.b32.xlu0 %v769, 1
        %v777 = vpop.permute.xlu0 %776
        %778 = vrot.lane.b32.xlu0 %v766, 1
        %v779 = vpop.permute.xlu0 %778
        %780 = vrot.lane.b32.xlu0 %v768, 1
        %v781 = vpop.permute.xlu0 %780
        %v782 = vsel %vm732, %v771, %v773
        %v783 = vsel %vm732, %v775, %v777
        %v784 = vsel %vm732, %v779, %v781
        %v791 = vmax.f32 %v439, %v771
        %v792 = vmax.f32 %v440, %v782
        %v793 = vmax.f32 %v441, %v775
        %v794 = vmax.f32 %v442, %v783
        %v795 = vmax.f32 %v443, %v779
        %v796 = vmax.f32 %v444, %v784
        %v797 = vstv %s208
        %v798 = vmul.f32 %v645, %v797
        %v799 = vmul.f32 %v664, %v797
        %v800 = vmul.f32 %v276, %v797
        %v801 = vmul.f32 %v281, %v797
        %v802 = vmul.f32 %v646, %v797
        %v803 = vmul.f32 %v665, %v797
        %v810 = vrot.slane %v798, 2
        %v811 = vrot.slane %v800, 2
        %v812 = vsel %vm654, %v810, %v811
        %v813 = vrot.slane %v799, 2
        %v814 = vrot.slane %v801, 2
        %v815 = vsel %vm654, %v813, %v814
        %v816 = vrot.slane %v802, 2
        %v817 = vsel %vm654, %v811, %v816
        %v818 = vrot.slane %v803, 2
        %v819 = vsel %vm654, %v814, %v818
        %820 = vrot.lane.b32.xlu0 %v812, 126
        %v821 = vpop.permute.xlu0 %820
        %822 = vrot.lane.b32.xlu0 %v815, 126
        %v823 = vpop.permute.xlu0 %822
        %824 = vrot.lane.b32.xlu0 %v817, 126
        %v825 = vpop.permute.xlu0 %824
        %826 = vrot.lane.b32.xlu0 %v819, 126
        %v827 = vpop.permute.xlu0 %826
        %v828 = vsel %vm265, %v821, %v823
        %v829 = vsel %vm265, %v825, %v827
        %v832 = vadd.f32 %v662, %v828
        %v833 = vadd.f32 %v663, %v829
        %v834 = vstv %s191
        %v835 = vmul.f32 %v645, %v834
        %v836 = vmul.f32 %v664, %v834
        %v837 = vmul.f32 %v276, %v834
        %v838 = vmul.f32 %v281, %v834
        %v839 = vmul.f32 %v646, %v834
        %v840 = vmul.f32 %v665, %v834
        %v847 = vrot.slane %v835, 1
        %v848 = vrot.slane %v837, 1
        %v849 = vsel %vm370, %v847, %v848
        %v850 = vrot.slane %v836, 1
        %v851 = vrot.slane %v838, 1
        %v852 = vsel %vm370, %v850, %v851
        %v853 = vrot.slane %v839, 1
        %v854 = vsel %vm370, %v848, %v853
        %v855 = vrot.slane %v840, 1
        %v856 = vsel %vm370, %v851, %v855
        %857 = vrot.lane.b32.xlu0 %v849, 127
        %v858 = vpop.permute.xlu0 %857
        %859 = vrot.lane.b32.xlu0 %v852, 127
        %v860 = vpop.permute.xlu0 %859
        %861 = vrot.lane.b32.xlu0 %v854, 127
        %v862 = vpop.permute.xlu0 %861
        %863 = vrot.lane.b32.xlu0 %v856, 127
        %v864 = vpop.permute.xlu0 %863
        %865 = vrot.lane.b32.xlu0 %v853, 127
        %v866 = vpop.permute.xlu0 %865
        %867 = vrot.lane.b32.xlu0 %v855, 127
        %v868 = vpop.permute.xlu0 %867
        %v869 = vsel %vm419, %v858, %v860
        %v870 = vsel %vm419, %v862, %v864
        %v871 = vsel %vm419, %v866, %v868
        %v878 = vadd.f32 %v565, %v869
        %v879 = vadd.f32 %v566, %v860
        %v880 = vadd.f32 %v567, %v870
        %v881 = vadd.f32 %v568, %v864
        %v882 = vadd.f32 %v569, %v871
        %v883 = vadd.f32 %v570, %v868
        %884 = vrot.lane.b32.xlu0 %v762, 127
        %v885 = vpop.permute.xlu0 %884
        %886 = vrot.lane.b32.xlu0 %v765, 127
        %v887 = vpop.permute.xlu0 %886
        %888 = vrot.lane.b32.xlu0 %v767, 127
        %v889 = vpop.permute.xlu0 %888
        %890 = vrot.lane.b32.xlu0 %v769, 127
        %v891 = vpop.permute.xlu0 %890
        %892 = vrot.lane.b32.xlu0 %v766, 127
        %v893 = vpop.permute.xlu0 %892
        %894 = vrot.lane.b32.xlu0 %v768, 127
        %v895 = vpop.permute.xlu0 %894
        %v896 = vsel %vm419, %v885, %v887
        %v897 = vsel %vm419, %v889, %v891
        %v898 = vsel %vm419, %v893, %v895
        %v905 = vmax.f32 %v598, %v896
        %v906 = vmax.f32 %v599, %v887
        %v907 = vmax.f32 %v600, %v897
        %v908 = vmax.f32 %v601, %v891
        %v909 = vmax.f32 %v602, %v898
        %v910 = vmax.f32 %v603, %v895
        %v911 = vstv %s209
        %v912 = vmul.f32 %v645, %v911
        %v913 = vmul.f32 %v664, %v911
        %v914 = vmul.f32 %v276, %v911
        %v915 = vmul.f32 %v281, %v911
        %v916 = vmul.f32 %v646, %v911
        %v917 = vmul.f32 %v665, %v911
        %v924 = vrot.slane %v912, 2
        %v925 = vrot.slane %v914, 2
        %v926 = vsel %vm654, %v924, %v925
        %v927 = vrot.slane %v913, 2
        %v928 = vrot.slane %v915, 2
        %v929 = vsel %vm654, %v927, %v928
        %v930 = vrot.slane %v916, 2
        %v931 = vsel %vm654, %v925, %v930
        %v932 = vrot.slane %v917, 2
        %v933 = vsel %vm654, %v928, %v932
        %934 = vrot.lane.b32.xlu0 %v926, 126
        %v935 = vpop.permute.xlu0 %934
        %936 = vrot.lane.b32.xlu0 %v929, 126
        %v937 = vpop.permute.xlu0 %936
        %938 = vrot.lane.b32.xlu0 %v931, 126
        %v939 = vpop.permute.xlu0 %938
        %940 = vrot.lane.b32.xlu0 %v933, 126
        %v941 = vpop.permute.xlu0 %940
        %v942 = vsel %vm265, %v935, %v937
        %v943 = vsel %vm265, %v939, %v941
        %v948 = vadd.f32 %v693, %v942
        %v949 = vadd.f32 %v694, %v937
        %v950 = vadd.f32 %v695, %v943
        %v951 = vadd.f32 %v696, %v941
        %v952 = vstv %s192
        %v953 = vmul.f32 %v645, %v952
        %v954 = vmul.f32 %v664, %v952
        %v955 = vmul.f32 %v276, %v952
        %v956 = vmul.f32 %v281, %v952
        %v957 = vmul.f32 %v646, %v952
        %v958 = vmul.f32 %v665, %v952
        %v965 = vrot.slane %v953, 1
        %v966 = vrot.slane %v955, 1
        %v967 = vsel %vm370, %v965, %v966
        %v968 = vrot.slane %v954, 1
        %v969 = vrot.slane %v956, 1
        %v970 = vsel %vm370, %v968, %v969
        %v971 = vrot.slane %v957, 1
        %v972 = vsel %vm370, %v966, %v971
        %v973 = vrot.slane %v958, 1
        %v974 = vsel %vm370, %v969, %v973
        %975 = vrot.lane.b32.xlu0 %v967, 127
        %v976 = vpop.permute.xlu0 %975
        %977 = vrot.lane.b32.xlu0 %v970, 127
        %v978 = vpop.permute.xlu0 %977
        %979 = vrot.lane.b32.xlu0 %v972, 127
        %v980 = vpop.permute.xlu0 %979
        %981 = vrot.lane.b32.xlu0 %v974, 127
        %v982 = vpop.permute.xlu0 %981
        %983 = vrot.lane.b32.xlu0 %v971, 127
        %v984 = vpop.permute.xlu0 %983
        %985 = vrot.lane.b32.xlu0 %v973, 127
        %v986 = vpop.permute.xlu0 %985
        %v987 = vsel %vm419, %v976, %v978
        %v988 = vsel %vm419, %v980, %v982
        %v989 = vsel %vm419, %v984, %v986
        %v996 = vadd.f32 %v742, %v987
        %v997 = vadd.f32 %v743, %v978
        %v998 = vadd.f32 %v744, %v988
        %v999 = vadd.f32 %v745, %v982
        %v1000 = vadd.f32 %v746, %v989
        %v1001 = vadd.f32 %v747, %v986
        %v1002 = vmax.f32 %v791, %v896
        %v1003 = vmax.f32 %v792, %v887
        %v1004 = vmax.f32 %v793, %v897
        %v1005 = vmax.f32 %v794, %v891
        %v1006 = vmax.f32 %v795, %v898
        %v1007 = vmax.f32 %v796, %v895
        %v1008 = vstv %s210
        %v1009 = vmul.f32 %v645, %v1008
        %v1010 = vmul.f32 %v664, %v1008
        %v1011 = vmul.f32 %v276, %v1008
        %v1012 = vmul.f32 %v281, %v1008
        %v1013 = vmul.f32 %v646, %v1008
        %v1014 = vmul.f32 %v665, %v1008
        %v1021 = vrot.slane %v1009, 2
        %v1022 = vrot.slane %v1011, 2
        %v1023 = vsel %vm654, %v1021, %v1022
        %v1024 = vrot.slane %v1010, 2
        %v1025 = vrot.slane %v1012, 2
        %v1026 = vsel %vm654, %v1024, %v1025
        %v1027 = vrot.slane %v1013, 2
        %v1028 = vsel %vm654, %v1022, %v1027
        %v1029 = vrot.slane %v1014, 2
        %v1030 = vsel %vm654, %v1025, %v1029
        %1031 = vrot.lane.b32.xlu0 %v1023, 124
        %v1032 = vpop.permute.xlu0 %1031
        %1033 = vrot.lane.b32.xlu0 %v1026, 124
        %v1034 = vpop.permute.xlu0 %1033
        %1035 = vrot.lane.b32.xlu0 %v1028, 124
        %v1036 = vpop.permute.xlu0 %1035
        %1037 = vrot.lane.b32.xlu0 %v1030, 124
        %v1038 = vpop.permute.xlu0 %1037
        %v1039 = vsel %vm354, %v1032, %v1034
        %v1040 = vsel %vm354, %v1036, %v1038
        %v1043 = vadd.f32 %v832, %v1039
        %v1044 = vadd.f32 %v833, %v1040
        %v1045 = vld [vmem:[%s182] sm:$0xf8]
        %v1046 = vld [vmem:[%s182 + $0x20] sm:$0x7]
        %v1047 = vstv %s211
        %v1048 = vmul.f32 %v1045, %v1047
        %v1049 = vmul.f32 %v276, %v1047
        %v1050 = vmul.f32 %v1046, %v1047
        %vm1054 = vcmask 1044480
        %v1055 = vrot.slane %v1048, 3
        %v1056 = vrot.slane %v1049, 3
        %v1057 = vsel %vm1054, %v1055, %v1056
        %v1058 = vrot.slane %v1050, 3
        %v1059 = vsel %vm1054, %v1056, %v1058
        %1060 = vrot.lane.b32.xlu0 %v1057, 1
        %v1061 = vpop.permute.xlu0 %1060
        %1062 = vrot.lane.b32.xlu0 %v1059, 1
        %v1063 = vpop.permute.xlu0 %1062
        %v1066 = vadd.f32 %v948, %v1061
        %v1067 = vadd.f32 %v949, %v1061
        %v1068 = vadd.f32 %v950, %v1063
        %v1069 = vadd.f32 %v951, %v1063
        %v1070 = vld [vmem:[%s182 + $0x8] sm:$0xf8]
        %v1071 = vld [vmem:[%s182 + $0x28] sm:$0x7]
        %v1072 = vstv %s212
        %v1073 = vmul.f32 %v1045, %v1072
        %v1074 = vmul.f32 %v1070, %v1072
        %v1075 = vmul.f32 %v276, %v1072
        %v1076 = vmul.f32 %v281, %v1072
        %v1077 = vmul.f32 %v1046, %v1072
        %v1078 = vmul.f32 %v1071, %v1072
        %v1085 = vrot.slane %v1073, 3
        %v1086 = vrot.slane %v1075, 3
        %v1087 = vsel %vm1054, %v1085, %v1086
        %v1088 = vrot.slane %v1074, 3
        %v1089 = vrot.slane %v1076, 3
        %v1090 = vsel %vm1054, %v1088, %v1089
        %v1091 = vrot.slane %v1077, 3
        %v1092 = vsel %vm1054, %v1086, %v1091
        %v1093 = vrot.slane %v1078, 3
        %v1094 = vsel %vm1054, %v1089, %v1093
        %1095 = vrot.lane.b32.xlu0 %v1087, 127
        %v1096 = vpop.permute.xlu0 %1095
        %1097 = vrot.lane.b32.xlu0 %v1090, 127
        %v1098 = vpop.permute.xlu0 %1097
        %1099 = vrot.lane.b32.xlu0 %v1092, 127
        %v1100 = vpop.permute.xlu0 %1099
        %1101 = vrot.lane.b32.xlu0 %v1094, 127
        %v1102 = vpop.permute.xlu0 %1101
        %v1103 = vsel %vm419, %v1096, %v1098
        %v1104 = vsel %vm419, %v1100, %v1102
        %v1107 = vadd.f32 %v1043, %v1103
        %v1108 = vadd.f32 %v1044, %v1104
        %v1109 = vstv %s193
        %v1110 = vmul.f32 %v1045, %v1109
        %v1111 = vmul.f32 %v1070, %v1109
        %v1112 = vmul.f32 %v276, %v1109
        %v1113 = vmul.f32 %v281, %v1109
        %v1114 = vmul.f32 %v1046, %v1109
        %v1115 = vmul.f32 %v1071, %v1109
        %v1122 = vrot.slane %v1110, 2
        %v1123 = vrot.slane %v1112, 2
        %v1124 = vsel %vm654, %v1122, %v1123
        %v1125 = vrot.slane %v1111, 2
        %v1126 = vrot.slane %v1113, 2
        %v1127 = vsel %vm654, %v1125, %v1126
        %v1128 = vrot.slane %v1114, 2
        %v1129 = vsel %vm654, %v1123, %v1128
        %v1130 = vrot.slane %v1115, 2
        %v1131 = vsel %vm654, %v1126, %v1130
        %v1138 = vadd.f32 %v878, %v1124
        %v1139 = vadd.f32 %v879, %v1127
        %v1140 = vadd.f32 %v880, %v1129
        %v1141 = vadd.f32 %v881, %v1131
        %v1142 = vadd.f32 %v882, %v1128
        %v1143 = vadd.f32 %v883, %v1130
        %v1144 = vld [vmem:[%s2] sm:$0xf8]
        %v1145 = vld [vmem:[%s2 + $0x8] sm:$0xf8]
        %v1146 = vld [vmem:[%s2 + $0x20] sm:$0x7]
        %v1147 = vld [vmem:[%s2 + $0x28] sm:$0x7]
        %v1148 = vadd.f32 %v1045, %v1144
        %v1149 = vadd.f32 %v1070, %v1145
        %v1150 = vadd.f32 %v1046, %v1146
        %v1151 = vadd.f32 %v1071, %v1147
        %v1156 = vrot.slane %v1148, 2
        %v1157 = vrot.slane %v441, 2
        %v1158 = vsel %vm654, %v1156, %v1157
        %v1159 = vrot.slane %v1149, 2
        %v1160 = vrot.slane %v442, 2
        %v1161 = vsel %vm654, %v1159, %v1160
        %v1162 = vrot.slane %v1150, 2
        %v1163 = vsel %vm654, %v1157, %v1162
        %v1164 = vrot.slane %v1151, 2
        %v1165 = vsel %vm654, %v1160, %v1164
        %v1172 = vmax.f32 %v905, %v1158
        %v1173 = vmax.f32 %v906, %v1161
        %v1174 = vmax.f32 %v907, %v1163
        %v1175 = vmax.f32 %v908, %v1165
        %v1176 = vmax.f32 %v909, %v1162
        %v1177 = vmax.f32 %v910, %v1164
        %v1178 = vstv %s213
        %v1179 = vmul.f32 %v1045, %v1178
        %v1180 = vmul.f32 %v1070, %v1178
        %v1181 = vmul.f32 %v276, %v1178
        %v1182 = vmul.f32 %v281, %v1178
        %v1183 = vmul.f32 %v1046, %v1178
        %v1184 = vmul.f32 %v1071, %v1178
        %v1191 = vrot.slane %v1179, 3
        %v1192 = vrot.slane %v1181, 3
        %v1193 = vsel %vm1054, %v1191, %v1192
        %v1194 = vrot.slane %v1180, 3
        %v1195 = vrot.slane %v1182, 3
        %v1196 = vsel %vm1054, %v1194, %v1195
        %v1197 = vrot.slane %v1183, 3
        %v1198 = vsel %vm1054, %v1192, %v1197
        %v1199 = vrot.slane %v1184, 3
        %v1200 = vsel %vm1054, %v1195, %v1199
        %1201 = vrot.lane.b32.xlu0 %v1193, 127
        %v1202 = vpop.permute.xlu0 %1201
        %1203 = vrot.lane.b32.xlu0 %v1196, 127
        %v1204 = vpop.permute.xlu0 %1203
        %1205 = vrot.lane.b32.xlu0 %v1198, 127
        %v1206 = vpop.permute.xlu0 %1205
        %1207 = vrot.lane.b32.xlu0 %v1200, 127
        %v1208 = vpop.permute.xlu0 %1207
        %v1209 = vsel %vm419, %v1202, %v1204
        %v1210 = vsel %vm419, %v1206, %v1208
        %v1215 = vadd.f32 %v1066, %v1209
        %v1216 = vadd.f32 %v1067, %v1204
        %v1217 = vadd.f32 %v1068, %v1210
        %v1218 = vadd.f32 %v1069, %v1208
        %v1219 = vstv %s194
        %v1220 = vmul.f32 %v1045, %v1219
        %v1221 = vmul.f32 %v1070, %v1219
        %v1222 = vmul.f32 %v276, %v1219
        %v1223 = vmul.f32 %v281, %v1219
        %v1224 = vmul.f32 %v1046, %v1219
        %v1225 = vmul.f32 %v1071, %v1219
        %v1232 = vrot.slane %v1220, 2
        %v1233 = vrot.slane %v1222, 2
        %v1234 = vsel %vm654, %v1232, %v1233
        %v1235 = vrot.slane %v1221, 2
        %v1236 = vrot.slane %v1223, 2
        %v1237 = vsel %vm654, %v1235, %v1236
        %v1238 = vrot.slane %v1224, 2
        %v1239 = vsel %vm654, %v1233, %v1238
        %v1240 = vrot.slane %v1225, 2
        %v1241 = vsel %vm654, %v1236, %v1240
        %v1248 = vadd.f32 %v996, %v1234
        %v1249 = vadd.f32 %v997, %v1237
        %v1250 = vadd.f32 %v998, %v1239
        %v1251 = vadd.f32 %v999, %v1241
        %v1252 = vadd.f32 %v1000, %v1238
        %v1253 = vadd.f32 %v1001, %v1240
        %v1254 = vmax.f32 %v1002, %v1158
        %v1255 = vmax.f32 %v1003, %v1161
        %v1256 = vmax.f32 %v1004, %v1163
        %v1257 = vmax.f32 %v1005, %v1165
        %v1258 = vmax.f32 %v1006, %v1162
        %v1259 = vmax.f32 %v1007, %v1164
        %v1260 = vstv %s214
        %v1261 = vmul.f32 %v1045, %v1260
        %v1262 = vmul.f32 %v1070, %v1260
        %v1263 = vmul.f32 %v276, %v1260
        %v1264 = vmul.f32 %v281, %v1260
        %v1265 = vmul.f32 %v1046, %v1260
        %v1266 = vmul.f32 %v1071, %v1260
        %v1273 = vrot.slane %v1261, 3
        %v1274 = vrot.slane %v1263, 3
        %v1275 = vsel %vm1054, %v1273, %v1274
        %v1276 = vrot.slane %v1262, 3
        %v1277 = vrot.slane %v1264, 3
        %v1278 = vsel %vm1054, %v1276, %v1277
        %v1279 = vrot.slane %v1265, 3
        %v1280 = vsel %vm1054, %v1274, %v1279
        %v1281 = vrot.slane %v1266, 3
        %v1282 = vsel %vm1054, %v1277, %v1281
        %1283 = vrot.lane.b32.xlu0 %v1275, 125
        %v1284 = vpop.permute.xlu0 %1283
        %1285 = vrot.lane.b32.xlu0 %v1278, 125
        %v1286 = vpop.permute.xlu0 %1285
        %1287 = vrot.lane.b32.xlu0 %v1280, 125
        %v1288 = vpop.permute.xlu0 %1287
        %1289 = vrot.lane.b32.xlu0 %v1282, 125
        %v1290 = vpop.permute.xlu0 %1289
        %v1291 = vsel %vm524, %v1284, %v1286
        %v1292 = vsel %vm524, %v1288, %v1290
        %v1295 = vadd.f32 %v1107, %v1291
        %v1296 = vadd.f32 %v1108, %v1292
        %v1297 = vstv %s195
        %v1298 = vmul.f32 %v1045, %v1297
        %v1299 = vmul.f32 %v1070, %v1297
        %v1300 = vmul.f32 %v276, %v1297
        %v1301 = vmul.f32 %v281, %v1297
        %v1302 = vmul.f32 %v1046, %v1297
        %v1303 = vmul.f32 %v1071, %v1297
        %v1310 = vrot.slane %v1298, 2
        %v1311 = vrot.slane %v1300, 2
        %v1312 = vsel %vm654, %v1310, %v1311
        %v1313 = vrot.slane %v1299, 2
        %v1314 = vrot.slane %v1301, 2
        %v1315 = vsel %vm654, %v1313, %v1314
        %v1316 = vrot.slane %v1302, 2
        %v1317 = vsel %vm654, %v1311, %v1316
        %v1318 = vrot.slane %v1303, 2
        %v1319 = vsel %vm654, %v1314, %v1318
        %1320 = vrot.lane.b32.xlu0 %v1312, 126
        %v1321 = vpop.permute.xlu0 %1320
        %1322 = vrot.lane.b32.xlu0 %v1315, 126
        %v1323 = vpop.permute.xlu0 %1322
        %1324 = vrot.lane.b32.xlu0 %v1317, 126
        %v1325 = vpop.permute.xlu0 %1324
        %1326 = vrot.lane.b32.xlu0 %v1319, 126
        %v1327 = vpop.permute.xlu0 %1326
        %1328 = vrot.lane.b32.xlu0 %v1316, 126
        %v1329 = vpop.permute.xlu0 %1328
        %1330 = vrot.lane.b32.xlu0 %v1318, 126
        %v1331 = vpop.permute.xlu0 %1330
        %v1332 = vsel %vm265, %v1321, %v1323
        %v1333 = vsel %vm265, %v1325, %v1327
        %v1334 = vsel %vm265, %v1329, %v1331
        %v1341 = vadd.f32 %v1138, %v1332
        %v1342 = vadd.f32 %v1139, %v1323
        %v1343 = vadd.f32 %v1140, %v1333
        %v1344 = vadd.f32 %v1141, %v1327
        %v1345 = vadd.f32 %v1142, %v1334
        %v1346 = vadd.f32 %v1143, %v1331
        %1347 = vrot.lane.b32.xlu0 %v1158, 126
        %v1348 = vpop.permute.xlu0 %1347
        %1349 = vrot.lane.b32.xlu0 %v1161, 126
        %v1350 = vpop.permute.xlu0 %1349
        %1351 = vrot.lane.b32.xlu0 %v1163, 126
        %v1352 = vpop.permute.xlu0 %1351
        %1353 = vrot.lane.b32.xlu0 %v1165, 126
        %v1354 = vpop.permute.xlu0 %1353
        %1355 = vrot.lane.b32.xlu0 %v1162, 126
        %v1356 = vpop.permute.xlu0 %1355
        %1357 = vrot.lane.b32.xlu0 %v1164, 126
        %v1358 = vpop.permute.xlu0 %1357
        %v1359 = vsel %vm265, %v1348, %v1350
        %v1360 = vsel %vm265, %v1352, %v1354
        %v1361 = vsel %vm265, %v1356, %v1358
        %v1368 = vmax.f32 %v1172, %v1359
        %v1369 = vmax.f32 %v1173, %v1350
        %v1370 = vmax.f32 %v1174, %v1360
        %v1371 = vmax.f32 %v1175, %v1354
        %v1372 = vmax.f32 %v1176, %v1361
        %v1373 = vmax.f32 %v1177, %v1358
        %v1374 = vstv %s215
        %v1375 = vmul.f32 %v1045, %v1374
        %v1376 = vmul.f32 %v1070, %v1374
        %v1377 = vmul.f32 %v276, %v1374
        %v1378 = vmul.f32 %v281, %v1374
        %v1379 = vmul.f32 %v1046, %v1374
        %v1380 = vmul.f32 %v1071, %v1374
        %v1387 = vrot.slane %v1375, 3
        %v1388 = vrot.slane %v1377, 3
        %v1389 = vsel %vm1054, %v1387, %v1388
        %v1390 = vrot.slane %v1376, 3
        %v1391 = vrot.slane %v1378, 3
        %v1392 = vsel %vm1054, %v1390, %v1391
        %v1393 = vrot.slane %v1379, 3
        %v1394 = vsel %vm1054, %v1388, %v1393
        %v1395 = vrot.slane %v1380, 3
        %v1396 = vsel %vm1054, %v1391, %v1395
        %1397 = vrot.lane.b32.xlu0 %v1389, 125
        %v1398 = vpop.permute.xlu0 %1397
        %1399 = vrot.lane.b32.xlu0 %v1392, 125
        %v1400 = vpop.permute.xlu0 %1399
        %1401 = vrot.lane.b32.xlu0 %v1394, 125
        %v1402 = vpop.permute.xlu0 %1401
        %1403 = vrot.lane.b32.xlu0 %v1396, 125
        %v1404 = vpop.permute.xlu0 %1403
        %v1405 = vsel %vm524, %v1398, %v1400
        %v1406 = vsel %vm524, %v1402, %v1404
        %v1411 = vadd.f32 %v1215, %v1405
        %v1412 = vadd.f32 %v1216, %v1400
        %v1413 = vadd.f32 %v1217, %v1406
        %v1414 = vadd.f32 %v1218, %v1404
        %v1415 = vld [vmem:[%s182] sm:$0xf0]
        %v1416 = vld [vmem:[%s182 + $0x20] sm:$0xf]
        %v1417 = vstv %s216
        %v1418 = vmul.f32 %v1415, %v1417
        %v1419 = vmul.f32 %v276, %v1417
        %v1420 = vmul.f32 %v1416, %v1417
        %vm1424 = vcmask 1043456
        %v1425 = vrot.slane %v1418, 4
        %v1426 = vrot.slane %v1419, 4
        %v1427 = vsel %vm1424, %v1425, %v1426
        %v1428 = vrot.slane %v1420, 4
        %v1429 = vsel %vm1424, %v1426, %v1428
        %v1432 = vadd.f32 %v1295, %v1427
        %v1433 = vadd.f32 %v1296, %v1429
        %v1434 = vld [vmem:[%s182 + $0x8] sm:$0xf0]
        %v1435 = vld [vmem:[%s182 + $0x28] sm:$0xf]
        %v1436 = vstv %s217
        %v1437 = vmul.f32 %v1415, %v1436
        %v1438 = vmul.f32 %v1434, %v1436
        %v1439 = vmul.f32 %v276, %v1436
        %v1440 = vmul.f32 %v281, %v1436
        %v1441 = vmul.f32 %v1416, %v1436
        %v1442 = vmul.f32 %v1435, %v1436
        %v1449 = vrot.slane %v1437, 4
        %v1450 = vrot.slane %v1439, 4
        %v1451 = vsel %vm1424, %v1449, %v1450
        %v1452 = vrot.slane %v1438, 4
        %v1453 = vrot.slane %v1440, 4
        %v1454 = vsel %vm1424, %v1452, %v1453
        %v1455 = vrot.slane %v1441, 4
        %v1456 = vsel %vm1424, %v1450, %v1455
        %v1457 = vrot.slane %v1442, 4
        %v1458 = vsel %vm1424, %v1453, %v1457
        %v1463 = vadd.f32 %v1411, %v1451
        %v1464 = vadd.f32 %v1412, %v1454
        %v1465 = vadd.f32 %v1413, %v1456
        %v1466 = vadd.f32 %v1414, %v1458
        %v1467 = vstv %s218
        %v1468 = vmul.f32 %v1415, %v1467
        %v1469 = vmul.f32 %v1434, %v1467
        %v1470 = vmul.f32 %v276, %v1467
        %v1471 = vmul.f32 %v281, %v1467
        %v1472 = vmul.f32 %v1416, %v1467
        %v1473 = vmul.f32 %v1435, %v1467
        %v1480 = vrot.slane %v1468, 4
        %v1481 = vrot.slane %v1470, 4
        %v1482 = vsel %vm1424, %v1480, %v1481
        %v1483 = vrot.slane %v1469, 4
        %v1484 = vrot.slane %v1471, 4
        %v1485 = vsel %vm1424, %v1483, %v1484
        %v1486 = vrot.slane %v1472, 4
        %v1487 = vsel %vm1424, %v1481, %v1486
        %v1488 = vrot.slane %v1473, 4
        %v1489 = vsel %vm1424, %v1484, %v1488
        %1490 = vrot.lane.b32.xlu0 %v1482, 126
        %v1491 = vpop.permute.xlu0 %1490
        %1492 = vrot.lane.b32.xlu0 %v1485, 126
        %v1493 = vpop.permute.xlu0 %1492
        %1494 = vrot.lane.b32.xlu0 %v1487, 126
        %v1495 = vpop.permute.xlu0 %1494
        %1496 = vrot.lane.b32.xlu0 %v1489, 126
        %v1497 = vpop.permute.xlu0 %1496
        %v1498 = vsel %vm265, %v1491, %v1493
        %v1499 = vsel %vm265, %v1495, %v1497
        %v1502 = vadd.f32 %v1432, %v1498
        %v1503 = vadd.f32 %v1433, %v1499
        %v1504 = vstv %s219
        %v1505 = vmul.f32 %v1415, %v1504
        %v1506 = vmul.f32 %v1434, %v1504
        %v1507 = vmul.f32 %v276, %v1504
        %v1508 = vmul.f32 %v281, %v1504
        %v1509 = vmul.f32 %v1416, %v1504
        %v1510 = vmul.f32 %v1435, %v1504
        %v1517 = vrot.slane %v1505, 4
        %v1518 = vrot.slane %v1507, 4
        %v1519 = vsel %vm1424, %v1517, %v1518
        %v1520 = vrot.slane %v1506, 4
        %v1521 = vrot.slane %v1508, 4
        %v1522 = vsel %vm1424, %v1520, %v1521
        %v1523 = vrot.slane %v1509, 4
        %v1524 = vsel %vm1424, %v1518, %v1523
        %v1525 = vrot.slane %v1510, 4
        %v1526 = vsel %vm1424, %v1521, %v1525
        %1527 = vrot.lane.b32.xlu0 %v1519, 126
        %v1528 = vpop.permute.xlu0 %1527
        %1529 = vrot.lane.b32.xlu0 %v1522, 126
        %v1530 = vpop.permute.xlu0 %1529
        %1531 = vrot.lane.b32.xlu0 %v1524, 126
        %v1532 = vpop.permute.xlu0 %1531
        %1533 = vrot.lane.b32.xlu0 %v1526, 126
        %v1534 = vpop.permute.xlu0 %1533
        %v1535 = vsel %vm265, %v1528, %v1530
        %v1536 = vsel %vm265, %v1532, %v1534
        %v1541 = vadd.f32 %v1463, %v1535
        %v1542 = vadd.f32 %v1464, %v1530
        %v1543 = vadd.f32 %v1465, %v1536
        %v1544 = vadd.f32 %v1466, %v1534
        %v1545 = vstv %s220
        %v1546 = vmul.f32 %v1415, %v1545
        %v1547 = vmul.f32 %v1434, %v1545
        %v1548 = vmul.f32 %v276, %v1545
        %v1549 = vmul.f32 %v281, %v1545
        %v1550 = vmul.f32 %v1416, %v1545
        %v1551 = vmul.f32 %v1435, %v1545
        %v1558 = vrot.slane %v1546, 4
        %v1559 = vrot.slane %v1548, 4
        %v1560 = vsel %vm1424, %v1558, %v1559
        %v1561 = vrot.slane %v1547, 4
        %v1562 = vrot.slane %v1549, 4
        %v1563 = vsel %vm1424, %v1561, %v1562
        %v1564 = vrot.slane %v1550, 4
        %v1565 = vsel %vm1424, %v1559, %v1564
        %v1566 = vrot.slane %v1551, 4
        %v1567 = vsel %vm1424, %v1562, %v1566
        %1568 = vrot.lane.b32.xlu0 %v1560, 124
        %v1569 = vpop.permute.xlu0 %1568
        %1570 = vrot.lane.b32.xlu0 %v1563, 124
        %v1571 = vpop.permute.xlu0 %1570
        %1572 = vrot.lane.b32.xlu0 %v1565, 124
        %v1573 = vpop.permute.xlu0 %1572
        %1574 = vrot.lane.b32.xlu0 %v1567, 124
        %v1575 = vpop.permute.xlu0 %1574
        %v1576 = vsel %vm354, %v1569, %v1571
        %v1577 = vsel %vm354, %v1573, %v1575
        %v1580 = vadd.f32 %v1502, %v1576
        %v1581 = vadd.f32 %v1503, %v1577
        %1588 = vrot.lane.b32.xlu0 %v1248, 127
        %v1589 = vpop.permute.xlu0 %1588
        %1590 = vrot.lane.b32.xlu0 %v1249, 127
        %v1591 = vpop.permute.xlu0 %1590
        %1592 = vrot.lane.b32.xlu0 %v1250, 127
        %v1593 = vpop.permute.xlu0 %1592
        %1594 = vrot.lane.b32.xlu0 %v1251, 127
        %v1595 = vpop.permute.xlu0 %1594
        %1596 = vrot.lane.b32.xlu0 %v1252, 127
        %v1597 = vpop.permute.xlu0 %1596
        %1598 = vrot.lane.b32.xlu0 %v1253, 127
        %v1599 = vpop.permute.xlu0 %1598
        %v1600 = vsel %vm419, %v1589, %v1591
        %v1601 = vsel %vm419, %v1593, %v1595
        %v1602 = vsel %vm419, %v1597, %v1599
        %v1609 = vadd.f32 %v1341, %v1600
        %v1610 = vadd.f32 %v1342, %v1591
        %v1611 = vadd.f32 %v1343, %v1601
        %v1612 = vadd.f32 %v1344, %v1595
        %v1613 = vadd.f32 %v1345, %v1602
        %v1614 = vadd.f32 %v1346, %v1599
        %v1615 = vstv %s185
        %v1616 = vadd.f32 %v1609, %v1615
        %v1617 = vadd.f32 %v1610, %v1615
        %v1618 = vadd.f32 %v1611, %v1615
        %v1619 = vadd.f32 %v1612, %v1615
        %v1620 = vadd.f32 %v1613, %v1615
        %v1621 = vadd.f32 %v1614, %v1615
        %v1622 = vmax.f32 %v1616, 0.0
        %v1623 = vmax.f32 %v1617, 0.0
        %v1624 = vmax.f32 %v1618, 0.0
        %v1625 = vmax.f32 %v1619, 0.0
        %v1626 = vmax.f32 %v1620, 0.0
        %v1627 = vmax.f32 %v1621, 0.0
        %1634 = vrot.lane.b32.xlu0 %v1622, 127
        %v1635 = vpop.permute.xlu0 %1634
        %1636 = vrot.lane.b32.xlu0 %v1623, 127
        %v1637 = vpop.permute.xlu0 %1636
        %1638 = vrot.lane.b32.xlu0 %v1624, 127
        %v1639 = vpop.permute.xlu0 %1638
        %1640 = vrot.lane.b32.xlu0 %v1625, 127
        %v1641 = vpop.permute.xlu0 %1640
        %1642 = vrot.lane.b32.xlu0 %v1626, 127
        %v1643 = vpop.permute.xlu0 %1642
        %1644 = vrot.lane.b32.xlu0 %v1627, 127
        %v1645 = vpop.permute.xlu0 %1644
        %v1646 = vsel %vm419, %v1635, %v1637
        %v1647 = vsel %vm419, %v1639, %v1641
        %v1648 = vsel %vm419, %v1643, %v1645
        %s1652 = scalar_lea.vmem %s177, 16 [#allocation5]
        %1653 = vst [vmem:[%s1652 - $0x1] sm:$0xfe] %v1646
        %1654 = vst [vmem:[%s1652 + $0x7] sm:$0xff] %v1647
        %1655 = vst [vmem:[%s1652 + $0xf] sm:$0x1] %v1648
        %1660 = vrot.lane.b32.xlu0 %v1541, 127
        %v1661 = vpop.permute.xlu0 %1660
        %1662 = vrot.lane.b32.xlu0 %v1542, 127
        %v1663 = vpop.permute.xlu0 %1662
        %1664 = vrot.lane.b32.xlu0 %v1543, 127
        %v1665 = vpop.permute.xlu0 %1664
        %1666 = vrot.lane.b32.xlu0 %v1544, 127
        %v1667 = vpop.permute.xlu0 %1666
        %v1668 = vsel %vm419, %v1661, %v1663
        %v1669 = vsel %vm419, %v1665, %v1667
        %v1672 = vadd.f32 %v1580, %v1668
        %v1673 = vadd.f32 %v1581, %v1669
        %v1674 = vstv %s186
        %v1675 = vadd.f32 %v1672, %v1674
        %v1676 = vadd.f32 %v1673, %v1674
        %v1677 = vmax.f32 %v1675, 0.0
        %v1678 = vmax.f32 %v1676, 0.0
        %s1679 = scalar_lea.vmem %s177, 32 [#allocation5]
        %1680 = vst [vmem:[%s1679] sm:$0xff] %v1677
        %1681 = vst [vmem:[%s1679 + $0x8] sm:$0xff] %v1678
        %1688 = vrot.lane.b32.xlu0 %v1254, 127
        %v1689 = vpop.permute.xlu0 %1688
        %1690 = vrot.lane.b32.xlu0 %v1255, 127
        %v1691 = vpop.permute.xlu0 %1690
        %1692 = vrot.lane.b32.xlu0 %v1256, 127
        %v1693 = vpop.permute.xlu0 %1692
        %1694 = vrot.lane.b32.xlu0 %v1257, 127
        %v1695 = vpop.permute.xlu0 %1694
        %1696 = vrot.lane.b32.xlu0 %v1258, 127
        %v1697 = vpop.permute.xlu0 %1696
        %1698 = vrot.lane.b32.xlu0 %v1259, 127
        %v1699 = vpop.permute.xlu0 %1698
        %v1700 = vsel %vm419, %v1689, %v1691
        %v1701 = vsel %vm419, %v1693, %v1695
        %v1702 = vsel %vm419, %v1697, %v1699
        %v1709 = vmax.f32 %v1368, %v1700
        %v1710 = vmax.f32 %v1369, %v1691
        %v1711 = vmax.f32 %v1370, %v1701
        %v1712 = vmax.f32 %v1371, %v1695
        %v1713 = vmax.f32 %v1372, %v1702
        %v1714 = vmax.f32 %v1373, %v1699
        %1721 = vrot.lane.b32.xlu0 %v1709, 127
        %v1722 = vpop.permute.xlu0 %1721
        %1723 = vrot.lane.b32.xlu0 %v1710, 127
        %v1724 = vpop.permute.xlu0 %1723
        %1725 = vrot.lane.b32.xlu0 %v1711, 127
        %v1726 = vpop.permute.xlu0 %1725
        %1727 = vrot.lane.b32.xlu0 %v1712, 127
        %v1728 = vpop.permute.xlu0 %1727
        %1729 = vrot.lane.b32.xlu0 %v1713, 127
        %v1730 = vpop.permute.xlu0 %1729
        %1731 = vrot.lane.b32.xlu0 %v1714, 127
        %v1732 = vpop.permute.xlu0 %1731
        %v1733 = vsel %vm419, %v1722, %v1724
        %v1734 = vsel %vm419, %v1726, %v1728
        %v1735 = vsel %vm419, %v1730, %v1732
        %s1739 = scalar_lea.vmem %s177, 48 [#allocation5]
        %1740 = vst [vmem:[%s1739 - $0x1] sm:$0xfe] %v1733
        %1741 = vst [vmem:[%s1739 + $0x7] sm:$0xff] %v1734
        %1742 = vst [vmem:[%s1739 + $0xf] sm:$0x1] %v1735
        %s1743 = sand.u32 %s94, 1
        %s1744 = scalar_lea.sflag [#allocation3], %s1743
        %s1745 = sand.u32 %s94, 1
        %s1746 = smul.addr %s1745, 64
        %s1747 = scalar_lea.vmem [#allocation5], %s1746
        // Predicated region
        $region37: #{tpu_custom_call.1} parent=31 // pred_check
          %p1748 = pneg %p104
        $region38: #{tpu_custom_call.1} parent=31 // pred_check_branch
          %1750 = sbr.rel (%p1748) target = $region40
        $region39: #{tpu_custom_call.1} parent=31 // pred_region
          %s1752 = ssub.s32 1024, 1024
          %1753 = vsyncadd %s1744, %s1752
          %s1754 = smul.addr %s18, 8
          %s1755 = smul.addr %s1754, 128
          %s1756 = scalar_lea.hbm %s3, %s1755
          %s1757 = sshll.u32 %s1747, 4
          %s1758 = int_to_ptr.vmem [resolvable:$true] %s1757
          %1763 = dma.vmem_to_hbm [thread:$0]  %s1758, 1024, %s1756, %s1744, 128, 128, 8
        $region40: #{tpu_custom_call.1} parent=31 // pred_fallthru
          _
      $region32: #{tpu_custom_call.1} parent=5 // pred_fallthru
        _
      %p1764 = scmp.le.s32.totalorder 2, %s13
      // Predicated region
      $region41: #{tpu_custom_call.1} parent=5 // pred_check
        %p1765 = pneg %p1764
      $region42: #{tpu_custom_call.1} parent=5 // pred_check_branch
        %1767 = sbr.rel (%p1765) target = $region44
      $region43: #{tpu_custom_call.1} parent=5 // pred_region
        %s1768 = ssub.s32 %s13, 2
        // Predicated region
        $region45: #{tpu_custom_call.1} parent=43 // pred_check
          %p1769 = pneg %p110
        $region46: #{tpu_custom_call.1} parent=43 // pred_check_branch
          %1771 = sbr.rel (%p1769) target = $region48
        $region47: #{tpu_custom_call.1} parent=43 // pred_region
          %s1772 = sand.u32 %s95, 1
          %s1773 = scalar_lea.sflag [#allocation3], %s1772
          %s1774 = sand.u32 %s95, 1
          %s1775 = smul.addr %s1774, 64
          %s1776 = scalar_lea.vmem [#allocation5], %s1775
          %1777 = dma.done %s1773, 1024
        $region48: #{tpu_custom_call.1} parent=43 // pred_fallthru
          _
      $region44: #{tpu_custom_call.1} parent=5 // pred_fallthru
        _
    $region6: #{tpu_custom_call.1} parent=1 // loop_footer
      %s17 = sadd.s32 1, %s13
    $region7: #{tpu_custom_call.1} parent=1 // loop_footer_branch
      %12 = sbr.rel target = $region3
    $region8: #{tpu_custom_call.1} parent=1 // loop_exit
      _
    %1778 = vsyncpa [#allocation3], 1
    %s1779 = scalar_lea.sflag [#allocation3], 1
    %1780 = vsyncpa %s1779, 1
    %1781 = vsyncpa [#allocation4], 1
    %s1782 = scalar_lea.sflag [#allocation4], 1
    %1783 = vsyncpa %s1782, 1

</llo_original>
